<compile_context>
chip_gen: v5e
topology: v5e:2x2
jax: 0.10.0
libtpu: 0.0.40
codegen_flags: <defaults>
</compile_context>

<pallas_src>
import jax
import jax.numpy as jnp
import numpy as np
from jax.experimental import pallas as pl
from jax.experimental.pallas import tpu as pltpu

# ----------------------------- problem sizes ------------------------------
B = 2            # batch
C_IN = 4         # in_channels
H = W = 16       # spatial
HP, WP = H + 2, W + 2
PP = HP * WP     # 324 padded positions (flattened, lane axis)
CB = C_IN * B    # channel-major flattened (channel, batch) rows
C_MID = 1024     # SeparableConv2D output channels (fixed by SELayer(1024))
SE_RED = 16      # SE reduction
C_SE = C_MID // SE_RED
NUM_CLASS = 10
NOUT_PAD = 128   # lane-dense padded classifier width
EPS = 1e-5


# ------------------------- single fused kernel ------------------------------
def fused_kernel(x_ref, wm_ref, bd_ref, wp_ref, bp_ref,
                 w1_ref, w2_ref, bns_ref, bnt_ref, wl_ref, bl_ref, o_ref):
    # x_ref : (CB, PP)  zero-padded input planes, row cb = c*B + b, lane = h'*WP + w'
    # wm_ref: (CB, PP)  per-row weighted window mask (3x3 depthwise weights x tap masks)
    x = x_ref[...]                                           # (CB, PP) f32

    # ---- depthwise 3x3 + spatial mean: ONE multiply + ONE lane reduction ----
    acc = jnp.sum(x * wm_ref[...], axis=1, keepdims=True)    # (CB, 1)
    s_dw = acc * (1.0 / (H * W)) + bd_ref[...]               # (CB, 1) = mean_hw(depthwise out)

    # ---- pointwise 1x1 conv commutes with the spatial mean ------------------
    # mean_y[b, :] = bp + sum_c s_dw[c*B + b] * wp[c, :]   (4 VPU broadcast-MACs)
    mean_y = jnp.zeros((B, C_MID), jnp.float32) + bp_ref[...]
    for c in range(C_IN):                                    # static unroll
        mean_y = mean_y + s_dw[c * B:(c + 1) * B, :] * wp_ref[c:c + 1, :]

    # ---- SE block (squeeze == mean_y since global-avg commutes) ------------
    z = jnp.maximum(
        jnp.dot(mean_y, w1_ref[...], preferred_element_type=jnp.float32), 0.0)
    z = jnp.dot(z, w2_ref[...], preferred_element_type=jnp.float32)
    # sigmoid: exp on the EUP; exact reciprocal kept for bit-parity with the reference.
    z = pl.reciprocal(1.0 + jnp.exp(-z), approx=False)       # (B, C_MID)

    # ---- SE scale + AdaptiveAvgPool2d((1,1)) + Flatten: mean_hw(y*z) == mean_y*z
    pooled = mean_y * z                                      # (B, C_MID)

    # ---- BatchNorm1d (eval mode, running stats folded to scale/shift) -------
    normed = pooled * bns_ref[...] + bnt_ref[...]

    # ---- final Linear (lane-dense padded to 128 outputs) --------------------
    out = jnp.dot(normed, wl_ref[...], preferred_element_type=jnp.float32) + bl_ref[...]
    o_ref[...] = out.astype(o_ref.dtype)


def fused_classifier(xflat, wmask, bdT, wp, bp, w1t, w2t, bns, bnt, wl_pad, bl_pad):
    z2 = lambda i: (0, 0)
    return pl.pallas_call(
        fused_kernel,
        out_shape=jax.ShapeDtypeStruct((B, NOUT_PAD), jnp.float32),
        grid=(1,),
        in_specs=[
            pl.BlockSpec((CB, PP), z2),          # xflat
            pl.BlockSpec((CB, PP), z2),          # weighted window mask
            pl.BlockSpec((CB, 1), z2),           # depthwise bias (per (c,b) row)
            pl.BlockSpec((C_IN, C_MID), z2),     # pointwise weight
            pl.BlockSpec((1, C_MID), z2),        # pointwise bias
            pl.BlockSpec((C_MID, C_SE), z2),     # SE fc1
            pl.BlockSpec((C_SE, C_MID), z2),     # SE fc2
            pl.BlockSpec((1, C_MID), z2),        # BN folded scale
            pl.BlockSpec((1, C_MID), z2),        # BN folded shift
            pl.BlockSpec((C_MID, NOUT_PAD), z2), # classifier weight (zero-padded)
            pl.BlockSpec((1, NOUT_PAD), z2),     # classifier bias (zero-padded)
        ],
        out_specs=pl.BlockSpec((B, NOUT_PAD), z2),
        compiler_params=pltpu.CompilerParams(
            # single tiny grid step: do not split across cores.
            dimension_semantics=("arbitrary",)),
    )(xflat, wmask, bdT, wp, bp, w1t, w2t, bns, bnt, wl_pad, bl_pad)


# ------------------------------ full forward --------------------------------
@jax.jit
def classifier_block(x_nchw, params):
    # Lane-dense layout: zero-pad the NCHW spatial plane and flatten it onto the
    # lane axis; rows are (channel-major, then batch) so per-channel slabs are
    # contiguous sublane slices inside the kernel.
    xp = jnp.pad(x_nchw, ((0, 0), (0, 0), (1, 1), (1, 1)))              # (B, C_IN, 18, 18)
    xflat = jnp.transpose(xp, (1, 0, 2, 3)).reshape(CB, PP)             # (C_IN*B, 324)

    # Static per-tap window masks of the flattened padded plane (constants under jit).
    idx = jnp.arange(PP, dtype=jnp.int32)
    pr = idx // WP
    pc = idx % WP
    tap_masks = []
    for k in range(9):
        dh, dw = divmod(k, 3)
        m = ((pr >= dh) & (pr < dh + H) & (pc >= dw) & (pc < dw + W))
        tap_masks.append(m.astype(jnp.float32))
    tap_masks = jnp.stack(tap_masks, axis=0)                            # (9, PP)

    # Weight preprocessing (layout only, exact):
    #  * collapse the 9 depthwise taps into one per-channel weighted window mask,
    #  * tile per (c, b) row, fold BN into scale/shift, lane-pad the classifier.
    wmask_c = params["wd"].T @ tap_masks                                # (C_IN, PP)
    wmask = jnp.repeat(wmask_c, B, axis=0)                              # (C_IN*B, PP)
    bdT = jnp.repeat(params["bd"].reshape(C_IN, 1), B, axis=0)          # (C_IN*B, 1)
    bn_scale = params["gamma"] * jax.lax.rsqrt(params["rvar"] + EPS)    # (1, C_MID)
    bn_shift = params["beta"] - params["rmean"] * bn_scale              # (1, C_MID)
    wl_pad = jnp.pad(params["wlt"], ((0, 0), (0, NOUT_PAD - NUM_CLASS)))
    bl_pad = jnp.pad(params["bl"], ((0, 0), (0, NOUT_PAD - NUM_CLASS)))

    out_pad = fused_classifier(xflat, wmask, bdT,
                               params["wp"], params["bp"],
                               params["w1t"], params["w2t"],
                               bn_scale, bn_shift,
                               wl_pad, bl_pad)
    return out_pad[:, :NUM_CLASS]


# ----------------------------- pure-JAX reference ----------------------------
def reference(x_nchw, p):
    """Direct (un-collapsed) implementation of the module pipeline."""
    xp = jnp.pad(x_nchw, ((0, 0), (0, 0), (1, 1), (1, 1)))              # (B, C_IN, 18, 18)
    acc = jnp.zeros((B, C_IN, H, W), jnp.float32) + p["bd"].reshape(1, C_IN, 1, 1)
    for k in range(9):
        dh, dw = divmod(k, 3)
        acc = acc + xp[:, :, dh:dh + H, dw:dw + W] * p["wd"][k].reshape(1, C_IN, 1, 1)
    dwf = acc.reshape(B, C_IN, H * W).transpose(0, 2, 1)                # (B, HW, C_IN)
    y = dwf @ p["wp"] + p["bp"]                                         # (B, HW, C_MID)
    s = y.mean(axis=1)                                                  # SE squeeze
    z = jnp.maximum(s @ p["w1t"], 0.0)
    z = 1.0 / (1.0 + jnp.exp(-(z @ p["w2t"])))                          # SE gate
    pooled = (y * z[:, None, :]).mean(axis=1)                           # scale + avgpool + flatten
    scale = p["gamma"] * jax.lax.rsqrt(p["rvar"] + EPS)
    normed = (pooled - p["rmean"]) * scale + p["beta"]                  # BN (eval)
    return normed @ p["wlt"] + p["bl"]                                  # classifier


# ---------------------------------- main ------------------------------------
if __name__ == "__main__":
    key = jax.random.PRNGKey(0)
    ks = jax.random.split(key, 12)

    params = {
        # depthwise conv: PyTorch weight (C_IN,1,3,3) stored as (9, C_IN)
        "wd": jax.random.normal(ks[0], (9, C_IN), jnp.float32) * 0.2,
        "bd": jax.random.normal(ks[1], (1, C_IN), jnp.float32) * 0.1,
        # pointwise conv: PyTorch weight (C_MID,C_IN,1,1) stored transposed (C_IN, C_MID)
        "wp": jax.random.normal(ks[2], (C_IN, C_MID), jnp.float32) * 0.1,
        "bp": jax.random.normal(ks[3], (1, C_MID), jnp.float32) * 0.1,
        # SE block: Linear(1024->64) and Linear(64->1024), stored transposed, bias-free
        "w1t": jax.random.normal(ks[4], (C_MID, C_SE), jnp.float32) * 0.05,
        "w2t": jax.random.normal(ks[5], (C_SE, C_MID), jnp.float32) * 0.05,
        # BatchNorm1d (eval mode)
        "gamma": 1.0 + 0.1 * jax.random.normal(ks[6], (1, C_MID), jnp.float32),
        "beta": 0.1 * jax.random.normal(ks[7], (1, C_MID), jnp.float32),
        "rmean": 0.1 * jax.random.normal(ks[8], (1, C_MID), jnp.float32),
        "rvar": jax.random.uniform(ks[9], (1, C_MID), jnp.float32, 0.5, 1.5),
        # final classifier: Linear(1024 -> num_class), stored transposed
        "wlt": jax.random.normal(ks[10], (C_MID, NUM_CLASS), jnp.float32) * 0.05,
        "bl": 0.1 * jax.random.normal(ks[11], (1, NUM_CLASS), jnp.float32),
    }

    x = jax.random.normal(jax.random.PRNGKey(42), (B, C_IN, H, W), jnp.float32)

    out = classifier_block(x, params)
    out = jax.block_until_ready(out)

    ref = reference(x, params)
    assert out.shape == (B, NUM_CLASS), out.shape
    np.testing.assert_allclose(np.asarray(out), np.asarray(ref), rtol=2e-3, atol=2e-3)

    print("KERNEL_OK")
</pallas_src>

<mosaic_0001>
module attributes {stable_mosaic.version = 11 : i64} {
  func.func @fused_kernel(%arg0: i32, %arg1: memref<8x324xf32, #tpu.memory_space<vmem>>, %arg2: memref<8x324xf32, #tpu.memory_space<vmem>>, %arg3: memref<8x1xf32, #tpu.memory_space<vmem>>, %arg4: memref<4x1024xf32, #tpu.memory_space<vmem>>, %arg5: memref<1x1024xf32, #tpu.memory_space<vmem>>, %arg6: memref<1024x64xf32, #tpu.memory_space<vmem>>, %arg7: memref<64x1024xf32, #tpu.memory_space<vmem>>, %arg8: memref<1x1024xf32, #tpu.memory_space<vmem>>, %arg9: memref<1x1024xf32, #tpu.memory_space<vmem>>, %arg10: memref<1024x128xf32, #tpu.memory_space<vmem>>, %arg11: memref<1x128xf32, #tpu.memory_space<vmem>>, %arg12: memref<2x128xf32, #tpu.memory_space<vmem>>) attributes {dimension_semantics = [#tpu.dimension_semantics<arbitrary>], iteration_bounds = array<i64: 1>, scalar_prefetch = 0 : i64, scratch_operands = 0 : i64, tpu.core_type = #tpu.core_type<tc>, window_params = [{pipeline_mode = #tpu.pipeline_mode<synchronous>, transform_indices = @transform_0, window_bounds = array<i64: 8, 324>}, {pipeline_mode = #tpu.pipeline_mode<synchronous>, transform_indices = @transform_1, window_bounds = array<i64: 8, 324>}, {pipeline_mode = #tpu.pipeline_mode<synchronous>, transform_indices = @transform_2, window_bounds = array<i64: 8, 1>}, {pipeline_mode = #tpu.pipeline_mode<synchronous>, transform_indices = @transform_3, window_bounds = array<i64: 4, 1024>}, {pipeline_mode = #tpu.pipeline_mode<synchronous>, transform_indices = @transform_4, window_bounds = array<i64: 1, 1024>}, {pipeline_mode = #tpu.pipeline_mode<synchronous>, transform_indices = @transform_5, window_bounds = array<i64: 1024, 64>}, {pipeline_mode = #tpu.pipeline_mode<synchronous>, transform_indices = @transform_6, window_bounds = array<i64: 64, 1024>}, {pipeline_mode = #tpu.pipeline_mode<synchronous>, transform_indices = @transform_7, window_bounds = array<i64: 1, 1024>}, {pipeline_mode = #tpu.pipeline_mode<synchronous>, transform_indices = @transform_8, window_bounds = array<i64: 1, 1024>}, {pipeline_mode = #tpu.pipeline_mode<synchronous>, transform_indices = @transform_9, window_bounds = array<i64: 1024, 128>}, {pipeline_mode = #tpu.pipeline_mode<synchronous>, transform_indices = @transform_10, window_bounds = array<i64: 1, 128>}, {pipeline_mode = #tpu.pipeline_mode<synchronous>, transform_indices = @transform_11, window_bounds = array<i64: 2, 128>}]} {
    %c0 = arith.constant 0 : index
    %c0_0 = arith.constant 0 : index
    %0 = vector.load %arg1[%c0, %c0_0] : memref<8x324xf32, #tpu.memory_space<vmem>>, vector<8x324xf32>
    %c0_1 = arith.constant 0 : index
    %c0_2 = arith.constant 0 : index
    %1 = vector.load %arg2[%c0_1, %c0_2] : memref<8x324xf32, #tpu.memory_space<vmem>>, vector<8x324xf32>
    %2 = arith.mulf %0, %1 : vector<8x324xf32>
    %cst = arith.constant dense<0.000000e+00> : vector<8xf32>
    %3 = vector.multi_reduction <add>, %2, %cst [1] : vector<8x324xf32> to vector<8xf32>
    %4 = vector.shape_cast %3 : vector<8xf32> to vector<8x1xf32>
    %cst_3 = arith.constant 3.906250e-03 : f32
    %5 = vector.broadcast %cst_3 : f32 to vector<8x1xf32>
    %6 = arith.mulf %4, %5 : vector<8x1xf32>
    %c0_4 = arith.constant 0 : index
    %c0_5 = arith.constant 0 : index
    %7 = vector.load %arg3[%c0_4, %c0_5] : memref<8x1xf32, #tpu.memory_space<vmem>>, vector<8x1xf32>
    %8 = arith.addf %6, %7 : vector<8x1xf32>
    %cst_6 = arith.constant 0.000000e+00 : f32
    %9 = vector.broadcast %cst_6 : f32 to vector<2x1024xf32>
    %c0_7 = arith.constant 0 : index
    %c0_8 = arith.constant 0 : index
    %10 = vector.load %arg5[%c0_7, %c0_8] : memref<1x1024xf32, #tpu.memory_space<vmem>>, vector<1x1024xf32>
    %11 = vector.broadcast %10 : vector<1x1024xf32> to vector<2x1024xf32>
    %12 = arith.addf %9, %11 : vector<2x1024xf32>
    %13 = vector.extract_strided_slice %8 {offsets = [0, 0], sizes = [2, 1], strides = [1, 1]} : vector<8x1xf32> to vector<2x1xf32>
    %c0_9 = arith.constant 0 : index
    %c0_10 = arith.constant 0 : index
    %14 = vector.load %arg4[%c0_9, %c0_10] : memref<4x1024xf32, #tpu.memory_space<vmem>>, vector<1x1024xf32>
    %15 = vector.broadcast %13 : vector<2x1xf32> to vector<2x1024xf32>
    %16 = vector.broadcast %14 : vector<1x1024xf32> to vector<2x1024xf32>
    %17 = arith.mulf %15, %16 : vector<2x1024xf32>
    %18 = arith.addf %12, %17 : vector<2x1024xf32>
    %19 = vector.extract_strided_slice %8 {offsets = [2, 0], sizes = [2, 1], strides = [1, 1]} : vector<8x1xf32> to vector<2x1xf32>
    %c1 = arith.constant 1 : index
    %c0_11 = arith.constant 0 : index
    %20 = vector.load %arg4[%c1, %c0_11] : memref<4x1024xf32, #tpu.memory_space<vmem>>, vector<1x1024xf32>
    %21 = vector.broadcast %19 : vector<2x1xf32> to vector<2x1024xf32>
    %22 = vector.broadcast %20 : vector<1x1024xf32> to vector<2x1024xf32>
    %23 = arith.mulf %21, %22 : vector<2x1024xf32>
    %24 = arith.addf %18, %23 : vector<2x1024xf32>
    %25 = vector.extract_strided_slice %8 {offsets = [4, 0], sizes = [2, 1], strides = [1, 1]} : vector<8x1xf32> to vector<2x1xf32>
    %c2 = arith.constant 2 : index
    %c0_12 = arith.constant 0 : index
    %26 = vector.load %arg4[%c2, %c0_12] : memref<4x1024xf32, #tpu.memory_space<vmem>>, vector<1x1024xf32>
    %27 = vector.broadcast %25 : vector<2x1xf32> to vector<2x1024xf32>
    %28 = vector.broadcast %26 : vector<1x1024xf32> to vector<2x1024xf32>
    %29 = arith.mulf %27, %28 : vector<2x1024xf32>
    %30 = arith.addf %24, %29 : vector<2x1024xf32>
    %31 = vector.extract_strided_slice %8 {offsets = [6, 0], sizes = [2, 1], strides = [1, 1]} : vector<8x1xf32> to vector<2x1xf32>
    %c3 = arith.constant 3 : index
    %c0_13 = arith.constant 0 : index
    %32 = vector.load %arg4[%c3, %c0_13] : memref<4x1024xf32, #tpu.memory_space<vmem>>, vector<1x1024xf32>
    %33 = vector.broadcast %31 : vector<2x1xf32> to vector<2x1024xf32>
    %34 = vector.broadcast %32 : vector<1x1024xf32> to vector<2x1024xf32>
    %35 = arith.mulf %33, %34 : vector<2x1024xf32>
    %36 = arith.addf %30, %35 : vector<2x1024xf32>
    %c0_14 = arith.constant 0 : index
    %c0_15 = arith.constant 0 : index
    %37 = vector.load %arg6[%c0_14, %c0_15] : memref<1024x64xf32, #tpu.memory_space<vmem>>, vector<1024x64xf32>
    %cst_16 = arith.constant dense<0.000000e+00> : vector<2x64xf32>
    %38 = tpu.matmul %36, %37, %cst_16 {dimension_numbers = #tpu.dot_dimension_numbers<[1], [0], [0], [1], [0, 0, 1, 1], [], []>} : vector<2x1024xf32>, vector<1024x64xf32>, vector<2x64xf32> -> vector<2x64xf32>
    %cst_17 = arith.constant 0.000000e+00 : f32
    %39 = vector.broadcast %cst_17 : f32 to vector<2x64xf32>
    %40 = arith.maximumf %38, %39 : vector<2x64xf32>
    %c0_18 = arith.constant 0 : index
    %c0_19 = arith.constant 0 : index
    %41 = vector.load %arg7[%c0_18, %c0_19] : memref<64x1024xf32, #tpu.memory_space<vmem>>, vector<64x1024xf32>
    %cst_20 = arith.constant dense<0.000000e+00> : vector<2x1024xf32>
    %42 = tpu.matmul %40, %41, %cst_20 {dimension_numbers = #tpu.dot_dimension_numbers<[1], [0], [0], [1], [0, 0, 1, 1], [], []>} : vector<2x64xf32>, vector<64x1024xf32>, vector<2x1024xf32> -> vector<2x1024xf32>
    %cst_21 = arith.constant 0.000000e+00 : f32
    %43 = vector.broadcast %cst_21 : f32 to vector<2x1024xf32>
    %44 = arith.subf %43, %42 : vector<2x1024xf32>
    %45 = math.exp %44 : vector<2x1024xf32>
    %cst_22 = arith.constant 1.000000e+00 : f32
    %46 = vector.broadcast %cst_22 : f32 to vector<2x1024xf32>
    %47 = arith.addf %46, %45 : vector<2x1024xf32>
    %48 = tpu.reciprocal %47 : vector<2x1024xf32> -> vector<2x1024xf32>
    %49 = arith.mulf %36, %48 : vector<2x1024xf32>
    %c0_23 = arith.constant 0 : index
    %c0_24 = arith.constant 0 : index
    %50 = vector.load %arg8[%c0_23, %c0_24] : memref<1x1024xf32, #tpu.memory_space<vmem>>, vector<1x1024xf32>
    %51 = vector.broadcast %50 : vector<1x1024xf32> to vector<2x1024xf32>
    %52 = arith.mulf %49, %51 : vector<2x1024xf32>
    %c0_25 = arith.constant 0 : index
    %c0_26 = arith.constant 0 : index
    %53 = vector.load %arg9[%c0_25, %c0_26] : memref<1x1024xf32, #tpu.memory_space<vmem>>, vector<1x1024xf32>
    %54 = vector.broadcast %53 : vector<1x1024xf32> to vector<2x1024xf32>
    %55 = arith.addf %52, %54 : vector<2x1024xf32>
    %c0_27 = arith.constant 0 : index
    %c0_28 = arith.constant 0 : index
    %56 = vector.load %arg10[%c0_27, %c0_28] : memref<1024x128xf32, #tpu.memory_space<vmem>>, vector<1024x128xf32>
    %cst_29 = arith.constant dense<0.000000e+00> : vector<2x128xf32>
    %57 = tpu.matmul %55, %56, %cst_29 {dimension_numbers = #tpu.dot_dimension_numbers<[1], [0], [0], [1], [0, 0, 1, 1], [], []>} : vector<2x1024xf32>, vector<1024x128xf32>, vector<2x128xf32> -> vector<2x128xf32>
    %c0_30 = arith.constant 0 : index
    %c0_31 = arith.constant 0 : index
    %58 = vector.load %arg11[%c0_30, %c0_31] : memref<1x128xf32, #tpu.memory_space<vmem>>, vector<1x128xf32>
    %59 = vector.broadcast %58 : vector<1x128xf32> to vector<2x128xf32>
    %60 = arith.addf %57, %59 : vector<2x128xf32>
    %c0_32 = arith.constant 0 : index
    %c0_33 = arith.constant 0 : index
    %61 = vector.load %arg12[%c0_32, %c0_33] : memref<2x128xf32, #tpu.memory_space<vmem>>, vector<2x128xf32>
    tpu.vector_store %arg12[%c0_32, %c0_33], %60 {strides = array<i32>} : memref<2x128xf32, #tpu.memory_space<vmem>>, vector<2x128xf32>,
    return
  }
  func.func @transform_0(%arg0: i32) -> (i32, i32) {
    %c0_i32 = arith.constant 0 : i32
    %c0_i32_0 = arith.constant 0 : i32
    %c0_i32_1 = arith.constant 0 : i32
    return %c0_i32, %c0_i32_0 : i32, i32
  }
  func.func @transform_1(%arg0: i32) -> (i32, i32) {
    %c0_i32 = arith.constant 0 : i32
    %c0_i32_0 = arith.constant 0 : i32
    %c0_i32_1 = arith.constant 0 : i32
    return %c0_i32, %c0_i32_0 : i32, i32
  }
  func.func @transform_2(%arg0: i32) -> (i32, i32) {
    %c0_i32 = arith.constant 0 : i32
    %c0_i32_0 = arith.constant 0 : i32
    %c0_i32_1 = arith.constant 0 : i32
    return %c0_i32, %c0_i32_0 : i32, i32
  }
  func.func @transform_3(%arg0: i32) -> (i32, i32) {
    %c0_i32 = arith.constant 0 : i32
    %c0_i32_0 = arith.constant 0 : i32
    %c0_i32_1 = arith.constant 0 : i32
    return %c0_i32, %c0_i32_0 : i32, i32
  }
  func.func @transform_4(%arg0: i32) -> (i32, i32) {
    %c0_i32 = arith.constant 0 : i32
    %c0_i32_0 = arith.constant 0 : i32
    %c0_i32_1 = arith.constant 0 : i32
    return %c0_i32, %c0_i32_0 : i32, i32
  }
  func.func @transform_5(%arg0: i32) -> (i32, i32) {
    %c0_i32 = arith.constant 0 : i32
    %c0_i32_0 = arith.constant 0 : i32
    %c0_i32_1 = arith.constant 0 : i32
    return %c0_i32, %c0_i32_0 : i32, i32
  }
  func.func @transform_6(%arg0: i32) -> (i32, i32) {
    %c0_i32 = arith.constant 0 : i32
    %c0_i32_0 = arith.constant 0 : i32
    %c0_i32_1 = arith.constant 0 : i32
    return %c0_i32, %c0_i32_0 : i32, i32
  }
  func.func @transform_7(%arg0: i32) -> (i32, i32) {
    %c0_i32 = arith.constant 0 : i32
    %c0_i32_0 = arith.constant 0 : i32
    %c0_i32_1 = arith.constant 0 : i32
    return %c0_i32, %c0_i32_0 : i32, i32
  }
  func.func @transform_8(%arg0: i32) -> (i32, i32) {
    %c0_i32 = arith.constant 0 : i32
    %c0_i32_0 = arith.constant 0 : i32
    %c0_i32_1 = arith.constant 0 : i32
    return %c0_i32, %c0_i32_0 : i32, i32
  }
  func.func @transform_9(%arg0: i32) -> (i32, i32) {
    %c0_i32 = arith.constant 0 : i32
    %c0_i32_0 = arith.constant 0 : i32
    %c0_i32_1 = arith.constant 0 : i32
    return %c0_i32, %c0_i32_0 : i32, i32
  }
  func.func @transform_10(%arg0: i32) -> (i32, i32) {
    %c0_i32 = arith.constant 0 : i32
    %c0_i32_0 = arith.constant 0 : i32
    %c0_i32_1 = arith.constant 0 : i32
    return %c0_i32, %c0_i32_0 : i32, i32
  }
  func.func @transform_11(%arg0: i32) -> (i32, i32) {
    %c0_i32 = arith.constant 0 : i32
    %c0_i32_0 = arith.constant 0 : i32
    %c0_i32_1 = arith.constant 0 : i32
    return %c0_i32, %c0_i32_0 : i32, i32
  }
}

</mosaic_0001>

<llo_original>
// kernel: classifier_block.1
$region0: #{classifier_block.1}
  #allocation0 [shape = 'u32[]', space=smem, size = 0x4, offset = 0x4, fixed_abs, tag = 'smem constant byte address 0x4 - core index']
  #allocation1 [shape = 'u32[72,128]{1,0:T(1,128)}', space=vmem, size = 0x9000, scoped, tag = 'internal scratch']
  %s0 = inlined_call_operand.vmem [shape: f32[8,324], index: 0, kind: input, shape index: {}]
  %s1 = inlined_call_operand.vmem [shape: f32[8,324], index: 1, kind: input, shape index: {}]
  %s2 = inlined_call_operand.vmem [shape: f32[8,1], index: 2, kind: input, shape index: {}]
  %s3 = inlined_call_operand.vmem [shape: f32[4,1024], index: 3, kind: input, shape index: {}]
  %s4 = inlined_call_operand.vmem [shape: f32[1,1024], index: 4, kind: input, shape index: {}]
  %s5 = inlined_call_operand.vmem [shape: f32[1024,64], index: 5, kind: input, shape index: {}]
  %s6 = inlined_call_operand.vmem [shape: f32[64,1024], index: 6, kind: input, shape index: {}]
  %s7 = inlined_call_operand.vmem [shape: f32[1,1024], index: 7, kind: input, shape index: {}]
  %s8 = inlined_call_operand.vmem [shape: f32[1,1024], index: 8, kind: input, shape index: {}]
  %s9 = inlined_call_operand.vmem [shape: f32[1024,128], index: 9, kind: input, shape index: {}]
  %s10 = inlined_call_operand.vmem [shape: f32[1,128], index: 10, kind: input, shape index: {}]
  %s11 = inlined_call_operand.hbm [shape: f32[2,128], index: 11, kind: output, shape index: {}]
  %s12 = sld [smem:[#allocation0]]
  $region54: #{classifier_block.1} parent=0
    _
  %s14 = ssub.s32 1, %s12
  %s15 = scalar_select 0, %s14, %s12
  $region1: #{classifier_block.1} parent=0
    #allocation2 [shape = 'u8[1024]{0}', space=vmem, size = 0x400, scoped, tag = 'output window, operand 0, single buffered']
    #allocation3 [shape = 's32[1]{0}', space=sflag, size = 0x4, scoped, tag = 'scoped memory for classifier_block.1']
    %16 = vsyncpa [#allocation3], 0
    // Predicated region
    $region2: #{classifier_block.1} parent=1 // pred_check
      _
    $region3: #{classifier_block.1} parent=1 // pred_check_branch
      %18 = sbr.rel (0) target = $region5
    $region4: #{classifier_block.1} parent=1 // pred_region
      _
    $region5: #{classifier_block.1} parent=1 // pred_fallthru
      _
    // Predicated region
    $region6: #{classifier_block.1} parent=1 // pred_check
      _
    $region7: #{classifier_block.1} parent=1 // pred_check_branch
      %20 = sbr.rel (0) target = $region9
    $region8: #{classifier_block.1} parent=1 // pred_region
      _
    $region9: #{classifier_block.1} parent=1 // pred_fallthru
      _
    // Predicated region
    $region10: #{classifier_block.1} parent=1 // pred_check
      _
    $region11: #{classifier_block.1} parent=1 // pred_check_branch
      %22 = sbr.rel (0) target = $region13
    $region12: #{classifier_block.1} parent=1 // pred_region
      _
    $region13: #{classifier_block.1} parent=1 // pred_fallthru
      _
    // Predicated region
    $region14: #{classifier_block.1} parent=1 // pred_check
      _
    $region15: #{classifier_block.1} parent=1 // pred_check_branch
      %24 = sbr.rel (0) target = $region17
    $region16: #{classifier_block.1} parent=1 // pred_region
      _
    $region17: #{classifier_block.1} parent=1 // pred_fallthru
      _
    // Predicated region
    $region18: #{classifier_block.1} parent=1 // pred_check
      _
    $region19: #{classifier_block.1} parent=1 // pred_check_branch
      %26 = sbr.rel (0) target = $region21
    $region20: #{classifier_block.1} parent=1 // pred_region
      _
    $region21: #{classifier_block.1} parent=1 // pred_fallthru
      _
    // Predicated region
    $region22: #{classifier_block.1} parent=1 // pred_check
      _
    $region23: #{classifier_block.1} parent=1 // pred_check_branch
      %28 = sbr.rel (0) target = $region25
    $region24: #{classifier_block.1} parent=1 // pred_region
      _
    $region25: #{classifier_block.1} parent=1 // pred_fallthru
      _
    // Predicated region
    $region26: #{classifier_block.1} parent=1 // pred_check
      _
    $region27: #{classifier_block.1} parent=1 // pred_check_branch
      %30 = sbr.rel (0) target = $region29
    $region28: #{classifier_block.1} parent=1 // pred_region
      _
    $region29: #{classifier_block.1} parent=1 // pred_fallthru
      _
    // Predicated region
    $region30: #{classifier_block.1} parent=1 // pred_check
      _
    $region31: #{classifier_block.1} parent=1 // pred_check_branch
      %32 = sbr.rel (0) target = $region33
    $region32: #{classifier_block.1} parent=1 // pred_region
      _
    $region33: #{classifier_block.1} parent=1 // pred_fallthru
      _
    // Predicated region
    $region34: #{classifier_block.1} parent=1 // pred_check
      _
    $region35: #{classifier_block.1} parent=1 // pred_check_branch
      %34 = sbr.rel (0) target = $region37
    $region36: #{classifier_block.1} parent=1 // pred_region
      _
    $region37: #{classifier_block.1} parent=1 // pred_fallthru
      _
    // Predicated region
    $region38: #{classifier_block.1} parent=1 // pred_check
      _
    $region39: #{classifier_block.1} parent=1 // pred_check_branch
      %36 = sbr.rel (0) target = $region41
    $region40: #{classifier_block.1} parent=1 // pred_region
      _
    $region41: #{classifier_block.1} parent=1 // pred_fallthru
      _
    // Predicated region
    $region42: #{classifier_block.1} parent=1 // pred_check
      _
    $region43: #{classifier_block.1} parent=1 // pred_check_branch
      %38 = sbr.rel (0) target = $region45
    $region44: #{classifier_block.1} parent=1 // pred_region
      _
    $region45: #{classifier_block.1} parent=1 // pred_fallthru
      _
    %v39 = vld [vmem:[%s0] sm:$0xff]
    %v40 = vld [vmem:[%s0 + $0x8] sm:$0xff]
    %v41 = vld [vmem:[%s0 + $0x10] sm:$0xff]
    %v42 = vld [vmem:[%s1] sm:$0xff]
    %v43 = vld [vmem:[%s1 + $0x8] sm:$0xff]
    %v44 = vld [vmem:[%s1 + $0x10] sm:$0xff]
    %v45 = vmul.f32 %v39, %v42
    %v46 = vmul.f32 %v40, %v43
    %v47 = vmul.f32 %v41, %v44
    %v48 = vadd.f32 %v45, %v46
    %vm49 = vcmask 556032
    %v50 = vsel %vm49, %v47, 0.0
    %v51 = vadd.f32 %v48, %v50
    %52 = vadd.xlane.f32.xlu0 %v51
    %v53 = vpop.xlane.xlu0 %52
    %v54 = vmul.f32 %v53, 0.00390625
    %v55 = vld [vmem:[%s2] sm:$0xff]
    %v56 = vadd.f32 %v54, %v55
    %v57 = vld [vmem:[%s4] sm:$0xff]
    %v59 = vperm.slane %v57, 0
    %v60 = vperm.slane %v57, 1
    %v61 = vperm.slane %v57, 2
    %v62 = vperm.slane %v57, 3
    %v63 = vperm.slane %v57, 4
    %v64 = vperm.slane %v57, 5
    %v65 = vperm.slane %v57, 6
    %v66 = vperm.slane %v57, 7
    %v75 = vadd.f32 %v59, 0.0
    %v76 = vadd.f32 %v60, 0.0
    %v77 = vadd.f32 %v61, 0.0
    %v78 = vadd.f32 %v62, 0.0
    %v79 = vadd.f32 %v63, 0.0
    %v80 = vadd.f32 %v64, 0.0
    %v81 = vadd.f32 %v65, 0.0
    %v82 = vadd.f32 %v66, 0.0
    %v83 = vld [vmem:[%s3] ss:$4 sm:$0xff]
    %85 = vset.pattern.permute.xlu0 0
    %86 = vperm.xlu0 %85, %v56
    %v87 = vpop.permute.xlu0 %86
    %v90 = vperm.slane %v83, 0
    %v91 = vperm.slane %v83, 1
    %v92 = vperm.slane %v83, 2
    %v93 = vperm.slane %v83, 3
    %v94 = vperm.slane %v83, 4
    %v95 = vperm.slane %v83, 5
    %v96 = vperm.slane %v83, 6
    %v97 = vperm.slane %v83, 7
    %v106 = vmul.f32 %v87, %v90
    %v107 = vmul.f32 %v87, %v91
    %v108 = vmul.f32 %v87, %v92
    %v109 = vmul.f32 %v87, %v93
    %v110 = vmul.f32 %v87, %v94
    %v111 = vmul.f32 %v87, %v95
    %v112 = vmul.f32 %v87, %v96
    %v113 = vmul.f32 %v87, %v97
    %v114 = vadd.f32 %v75, %v106
    %v115 = vadd.f32 %v76, %v107
    %v116 = vadd.f32 %v77, %v108
    %v117 = vadd.f32 %v78, %v109
    %v118 = vadd.f32 %v79, %v110
    %v119 = vadd.f32 %v80, %v111
    %v120 = vadd.f32 %v81, %v112
    %v121 = vadd.f32 %v82, %v113
    %s122 = scalar_lea.vmem %s3, 1
    %v123 = vld [vmem:[%s122] ss:$4 sm:$0xff]
    %v125 = vperm.slane %v123, 0
    %v126 = vperm.slane %v123, 1
    %v127 = vperm.slane %v123, 2
    %v128 = vperm.slane %v123, 3
    %v129 = vperm.slane %v123, 4
    %v130 = vperm.slane %v123, 5
    %v131 = vperm.slane %v123, 6
    %v132 = vperm.slane %v123, 7
    %v141 = vmul.f32 %v87, %v125
    %v142 = vmul.f32 %v87, %v126
    %v143 = vmul.f32 %v87, %v127
    %v144 = vmul.f32 %v87, %v128
    %v145 = vmul.f32 %v87, %v129
    %v146 = vmul.f32 %v87, %v130
    %v147 = vmul.f32 %v87, %v131
    %v148 = vmul.f32 %v87, %v132
    %v157 = vrot.slane %v141, 2
    %v158 = vrot.slane %v142, 2
    %v159 = vrot.slane %v143, 2
    %v160 = vrot.slane %v144, 2
    %v161 = vrot.slane %v145, 2
    %v162 = vrot.slane %v146, 2
    %v163 = vrot.slane %v147, 2
    %v164 = vrot.slane %v148, 2
    %v173 = vadd.f32 %v114, %v157
    %v174 = vadd.f32 %v115, %v158
    %v175 = vadd.f32 %v116, %v159
    %v176 = vadd.f32 %v117, %v160
    %v177 = vadd.f32 %v118, %v161
    %v178 = vadd.f32 %v119, %v162
    %v179 = vadd.f32 %v120, %v163
    %v180 = vadd.f32 %v121, %v164
    %s181 = scalar_lea.vmem %s3, 2
    %v182 = vld [vmem:[%s181] ss:$4 sm:$0xff]
    %v184 = vperm.slane %v182, 0
    %v185 = vperm.slane %v182, 1
    %v186 = vperm.slane %v182, 2
    %v187 = vperm.slane %v182, 3
    %v188 = vperm.slane %v182, 4
    %v189 = vperm.slane %v182, 5
    %v190 = vperm.slane %v182, 6
    %v191 = vperm.slane %v182, 7
    %v200 = vmul.f32 %v87, %v184
    %v201 = vmul.f32 %v87, %v185
    %v202 = vmul.f32 %v87, %v186
    %v203 = vmul.f32 %v87, %v187
    %v204 = vmul.f32 %v87, %v188
    %v205 = vmul.f32 %v87, %v189
    %v206 = vmul.f32 %v87, %v190
    %v207 = vmul.f32 %v87, %v191
    %v216 = vrot.slane %v200, 4
    %v217 = vrot.slane %v201, 4
    %v218 = vrot.slane %v202, 4
    %v219 = vrot.slane %v203, 4
    %v220 = vrot.slane %v204, 4
    %v221 = vrot.slane %v205, 4
    %v222 = vrot.slane %v206, 4
    %v223 = vrot.slane %v207, 4
    %v232 = vadd.f32 %v173, %v216
    %v233 = vadd.f32 %v174, %v217
    %v234 = vadd.f32 %v175, %v218
    %v235 = vadd.f32 %v176, %v219
    %v236 = vadd.f32 %v177, %v220
    %v237 = vadd.f32 %v178, %v221
    %v238 = vadd.f32 %v179, %v222
    %v239 = vadd.f32 %v180, %v223
    %s240 = scalar_lea.vmem %s3, 3
    %v241 = vld [vmem:[%s240] ss:$4 sm:$0xff]
    %v243 = vperm.slane %v241, 0
    %v244 = vperm.slane %v241, 1
    %v245 = vperm.slane %v241, 2
    %v246 = vperm.slane %v241, 3
    %v247 = vperm.slane %v241, 4
    %v248 = vperm.slane %v241, 5
    %v249 = vperm.slane %v241, 6
    %v250 = vperm.slane %v241, 7
    %v259 = vmul.f32 %v87, %v243
    %v260 = vmul.f32 %v87, %v244
    %v261 = vmul.f32 %v87, %v245
    %v262 = vmul.f32 %v87, %v246
    %v263 = vmul.f32 %v87, %v247
    %v264 = vmul.f32 %v87, %v248
    %v265 = vmul.f32 %v87, %v249
    %v266 = vmul.f32 %v87, %v250
    %v275 = vrot.slane %v259, 6
    %v276 = vrot.slane %v260, 6
    %v277 = vrot.slane %v261, 6
    %v278 = vrot.slane %v262, 6
    %v279 = vrot.slane %v263, 6
    %v280 = vrot.slane %v264, 6
    %v281 = vrot.slane %v265, 6
    %v282 = vrot.slane %v266, 6
    %v291 = vadd.f32 %v232, %v275
    %v292 = vadd.f32 %v233, %v276
    %v293 = vadd.f32 %v234, %v277
    %v294 = vadd.f32 %v235, %v278
    %v295 = vadd.f32 %v236, %v279
    %v296 = vadd.f32 %v237, %v280
    %v297 = vadd.f32 %v238, %v281
    %v298 = vadd.f32 %v239, %v282
    %v299 = vld [vmem:[%s5] sm:$0xff]
    %v300 = vld [vmem:[%s5 + $0x8] sm:$0xff]
    %v301 = vld [vmem:[%s5 + $0x10] sm:$0xff]
    %v302 = vld [vmem:[%s5 + $0x18] sm:$0xff]
    %v303 = vld [vmem:[%s5 + $0x20] sm:$0xff]
    %v304 = vld [vmem:[%s5 + $0x28] sm:$0xff]
    %v305 = vld [vmem:[%s5 + $0x30] sm:$0xff]
    %v306 = vld [vmem:[%s5 + $0x38] sm:$0xff]
    %v307 = vld [vmem:[%s5 + $0x40] sm:$0xff]
    %v308 = vld [vmem:[%s5 + $0x48] sm:$0xff]
    %v309 = vld [vmem:[%s5 + $0x50] sm:$0xff]
    %v310 = vld [vmem:[%s5 + $0x58] sm:$0xff]
    %v311 = vld [vmem:[%s5 + $0x60] sm:$0xff]
    %v312 = vld [vmem:[%s5 + $0x68] sm:$0xff]
    %v313 = vld [vmem:[%s5 + $0x70] sm:$0xff]
    %v314 = vld [vmem:[%s5 + $0x78] sm:$0xff]
    %v315 = vld [vmem:[%s5 + $0x80] sm:$0xff]
    %v316 = vld [vmem:[%s5 + $0x88] sm:$0xff]
    %v317 = vld [vmem:[%s5 + $0x90] sm:$0xff]
    %v318 = vld [vmem:[%s5 + $0x98] sm:$0xff]
    %v319 = vld [vmem:[%s5 + $0xa0] sm:$0xff]
    %v320 = vld [vmem:[%s5 + $0xa8] sm:$0xff]
    %v321 = vld [vmem:[%s5 + $0xb0] sm:$0xff]
    %v322 = vld [vmem:[%s5 + $0xb8] sm:$0xff]
    %v323 = vld [vmem:[%s5 + $0xc0] sm:$0xff]
    %v324 = vld [vmem:[%s5 + $0xc8] sm:$0xff]
    %v325 = vld [vmem:[%s5 + $0xd0] sm:$0xff]
    %v326 = vld [vmem:[%s5 + $0xd8] sm:$0xff]
    %v327 = vld [vmem:[%s5 + $0xe0] sm:$0xff]
    %v328 = vld [vmem:[%s5 + $0xe8] sm:$0xff]
    %v329 = vld [vmem:[%s5 + $0xf0] sm:$0xff]
    %v330 = vld [vmem:[%s5 + $0xf8] sm:$0xff]
    %v331 = vld [vmem:[%s5 + $0x100] sm:$0xff]
    %v332 = vld [vmem:[%s5 + $0x108] sm:$0xff]
    %v333 = vld [vmem:[%s5 + $0x110] sm:$0xff]
    %v334 = vld [vmem:[%s5 + $0x118] sm:$0xff]
    %v335 = vld [vmem:[%s5 + $0x120] sm:$0xff]
    %v336 = vld [vmem:[%s5 + $0x128] sm:$0xff]
    %v337 = vld [vmem:[%s5 + $0x130] sm:$0xff]
    %v338 = vld [vmem:[%s5 + $0x138] sm:$0xff]
    %v339 = vld [vmem:[%s5 + $0x140] sm:$0xff]
    %v340 = vld [vmem:[%s5 + $0x148] sm:$0xff]
    %v341 = vld [vmem:[%s5 + $0x150] sm:$0xff]
    %v342 = vld [vmem:[%s5 + $0x158] sm:$0xff]
    %v343 = vld [vmem:[%s5 + $0x160] sm:$0xff]
    %v344 = vld [vmem:[%s5 + $0x168] sm:$0xff]
    %v345 = vld [vmem:[%s5 + $0x170] sm:$0xff]
    %v346 = vld [vmem:[%s5 + $0x178] sm:$0xff]
    %v347 = vld [vmem:[%s5 + $0x180] sm:$0xff]
    %v348 = vld [vmem:[%s5 + $0x188] sm:$0xff]
    %v349 = vld [vmem:[%s5 + $0x190] sm:$0xff]
    %v350 = vld [vmem:[%s5 + $0x198] sm:$0xff]
    %v351 = vld [vmem:[%s5 + $0x1a0] sm:$0xff]
    %v352 = vld [vmem:[%s5 + $0x1a8] sm:$0xff]
    %v353 = vld [vmem:[%s5 + $0x1b0] sm:$0xff]
    %v354 = vld [vmem:[%s5 + $0x1b8] sm:$0xff]
    %v355 = vld [vmem:[%s5 + $0x1c0] sm:$0xff]
    %v356 = vld [vmem:[%s5 + $0x1c8] sm:$0xff]
    %v357 = vld [vmem:[%s5 + $0x1d0] sm:$0xff]
    %v358 = vld [vmem:[%s5 + $0x1d8] sm:$0xff]
    %v359 = vld [vmem:[%s5 + $0x1e0] sm:$0xff]
    %v360 = vld [vmem:[%s5 + $0x1e8] sm:$0xff]
    %v361 = vld [vmem:[%s5 + $0x1f0] sm:$0xff]
    %v362 = vld [vmem:[%s5 + $0x1f8] sm:$0xff]
    %v363 = vld [vmem:[%s5 + $0x200] sm:$0xff]
    %v364 = vld [vmem:[%s5 + $0x208] sm:$0xff]
    %v365 = vld [vmem:[%s5 + $0x210] sm:$0xff]
    %v366 = vld [vmem:[%s5 + $0x218] sm:$0xff]
    %v367 = vld [vmem:[%s5 + $0x220] sm:$0xff]
    %v368 = vld [vmem:[%s5 + $0x228] sm:$0xff]
    %v369 = vld [vmem:[%s5 + $0x230] sm:$0xff]
    %v370 = vld [vmem:[%s5 + $0x238] sm:$0xff]
    %v371 = vld [vmem:[%s5 + $0x240] sm:$0xff]
    %v372 = vld [vmem:[%s5 + $0x248] sm:$0xff]
    %v373 = vld [vmem:[%s5 + $0x250] sm:$0xff]
    %v374 = vld [vmem:[%s5 + $0x258] sm:$0xff]
    %v375 = vld [vmem:[%s5 + $0x260] sm:$0xff]
    %v376 = vld [vmem:[%s5 + $0x268] sm:$0xff]
    %v377 = vld [vmem:[%s5 + $0x270] sm:$0xff]
    %v378 = vld [vmem:[%s5 + $0x278] sm:$0xff]
    %v379 = vld [vmem:[%s5 + $0x280] sm:$0xff]
    %v380 = vld [vmem:[%s5 + $0x288] sm:$0xff]
    %v381 = vld [vmem:[%s5 + $0x290] sm:$0xff]
    %v382 = vld [vmem:[%s5 + $0x298] sm:$0xff]
    %v383 = vld [vmem:[%s5 + $0x2a0] sm:$0xff]
    %v384 = vld [vmem:[%s5 + $0x2a8] sm:$0xff]
    %v385 = vld [vmem:[%s5 + $0x2b0] sm:$0xff]
    %v386 = vld [vmem:[%s5 + $0x2b8] sm:$0xff]
    %v387 = vld [vmem:[%s5 + $0x2c0] sm:$0xff]
    %v388 = vld [vmem:[%s5 + $0x2c8] sm:$0xff]
    %v389 = vld [vmem:[%s5 + $0x2d0] sm:$0xff]
    %v390 = vld [vmem:[%s5 + $0x2d8] sm:$0xff]
    %v391 = vld [vmem:[%s5 + $0x2e0] sm:$0xff]
    %v392 = vld [vmem:[%s5 + $0x2e8] sm:$0xff]
    %v393 = vld [vmem:[%s5 + $0x2f0] sm:$0xff]
    %v394 = vld [vmem:[%s5 + $0x2f8] sm:$0xff]
    %v395 = vld [vmem:[%s5 + $0x300] sm:$0xff]
    %v396 = vld [vmem:[%s5 + $0x308] sm:$0xff]
    %v397 = vld [vmem:[%s5 + $0x310] sm:$0xff]
    %v398 = vld [vmem:[%s5 + $0x318] sm:$0xff]
    %v399 = vld [vmem:[%s5 + $0x320] sm:$0xff]
    %v400 = vld [vmem:[%s5 + $0x328] sm:$0xff]
    %v401 = vld [vmem:[%s5 + $0x330] sm:$0xff]
    %v402 = vld [vmem:[%s5 + $0x338] sm:$0xff]
    %v403 = vld [vmem:[%s5 + $0x340] sm:$0xff]
    %v404 = vld [vmem:[%s5 + $0x348] sm:$0xff]
    %v405 = vld [vmem:[%s5 + $0x350] sm:$0xff]
    %v406 = vld [vmem:[%s5 + $0x358] sm:$0xff]
    %v407 = vld [vmem:[%s5 + $0x360] sm:$0xff]
    %v408 = vld [vmem:[%s5 + $0x368] sm:$0xff]
    %v409 = vld [vmem:[%s5 + $0x370] sm:$0xff]
    %v410 = vld [vmem:[%s5 + $0x378] sm:$0xff]
    %v411 = vld [vmem:[%s5 + $0x380] sm:$0xff]
    %v412 = vld [vmem:[%s5 + $0x388] sm:$0xff]
    %v413 = vld [vmem:[%s5 + $0x390] sm:$0xff]
    %v414 = vld [vmem:[%s5 + $0x398] sm:$0xff]
    %v415 = vld [vmem:[%s5 + $0x3a0] sm:$0xff]
    %v416 = vld [vmem:[%s5 + $0x3a8] sm:$0xff]
    %v417 = vld [vmem:[%s5 + $0x3b0] sm:$0xff]
    %v418 = vld [vmem:[%s5 + $0x3b8] sm:$0xff]
    %v419 = vld [vmem:[%s5 + $0x3c0] sm:$0xff]
    %v420 = vld [vmem:[%s5 + $0x3c8] sm:$0xff]
    %v421 = vld [vmem:[%s5 + $0x3d0] sm:$0xff]
    %v422 = vld [vmem:[%s5 + $0x3d8] sm:$0xff]
    %v423 = vld [vmem:[%s5 + $0x3e0] sm:$0xff]
    %v424 = vld [vmem:[%s5 + $0x3e8] sm:$0xff]
    %v425 = vld [vmem:[%s5 + $0x3f0] sm:$0xff]
    %v426 = vld [vmem:[%s5 + $0x3f8] sm:$0xff]
    %427 = vmatpush.msra.mxu0 %v314
    %428 = vmatpush.msra.mxu0 %v313
    %429 = vmatpush.msra.mxu0 %v312
    %430 = vmatpush.msra.mxu0 %v311
    %431 = vmatpush.msra.mxu0 %v310
    %432 = vmatpush.msra.mxu0 %v309
    %433 = vmatpush.msra.mxu0 %v308
    %434 = vmatpush.msra.mxu0 %v307
    %435 = vmatpush.msra.mxu0 %v306
    %436 = vmatpush.msra.mxu0 %v305
    %437 = vmatpush.msra.mxu0 %v304
    %438 = vmatpush.msra.mxu0 %v303
    %439 = vmatpush.msra.mxu0 %v302
    %440 = vmatpush.msra.mxu0 %v301
    %441 = vmatpush.msra.mxu0 %v300
    %442 = vmatpush.msra.mxu0 %v299
    %443 = vmatmul.f32.gmra.mxu0 %v291
    %v444 = vpop.f32.mrf.mxu0
    %v445 = vadd.f32 0.0, %v444
    %446 = vdwg.mxu0
    %447 = vmatpush.msra.mxu0 %v330
    %448 = vmatpush.msra.mxu0 %v329
    %449 = vmatpush.msra.mxu0 %v328
    %450 = vmatpush.msra.mxu0 %v327
    %451 = vmatpush.msra.mxu0 %v326
    %452 = vmatpush.msra.mxu0 %v325
    %453 = vmatpush.msra.mxu0 %v324
    %454 = vmatpush.msra.mxu0 %v323
    %455 = vmatpush.msra.mxu0 %v322
    %456 = vmatpush.msra.mxu0 %v321
    %457 = vmatpush.msra.mxu0 %v320
    %458 = vmatpush.msra.mxu0 %v319
    %459 = vmatpush.msra.mxu0 %v318
    %460 = vmatpush.msra.mxu0 %v317
    %461 = vmatpush.msra.mxu0 %v316
    %462 = vmatpush.msra.mxu0 %v315
    %463 = vmatmul.f32.gmra.mxu0 %v292
    %v464 = vpop.f32.mrf.mxu0
    %v465 = vadd.f32 %v445, %v464
    %466 = vdwg.mxu0
    %467 = vmatpush.msra.mxu0 %v346
    %468 = vmatpush.msra.mxu0 %v345
    %469 = vmatpush.msra.mxu0 %v344
    %470 = vmatpush.msra.mxu0 %v343
    %471 = vmatpush.msra.mxu0 %v342
    %472 = vmatpush.msra.mxu0 %v341
    %473 = vmatpush.msra.mxu0 %v340
    %474 = vmatpush.msra.mxu0 %v339
    %475 = vmatpush.msra.mxu0 %v338
    %476 = vmatpush.msra.mxu0 %v337
    %477 = vmatpush.msra.mxu0 %v336
    %478 = vmatpush.msra.mxu0 %v335
    %479 = vmatpush.msra.mxu0 %v334
    %480 = vmatpush.msra.mxu0 %v333
    %481 = vmatpush.msra.mxu0 %v332
    %482 = vmatpush.msra.mxu0 %v331
    %483 = vmatmul.f32.gmra.mxu0 %v293
    %v484 = vpop.f32.mrf.mxu0
    %v485 = vadd.f32 %v465, %v484
    %486 = vdwg.mxu0
    %487 = vmatpush.msra.mxu0 %v362
    %488 = vmatpush.msra.mxu0 %v361
    %489 = vmatpush.msra.mxu0 %v360
    %490 = vmatpush.msra.mxu0 %v359
    %491 = vmatpush.msra.mxu0 %v358
    %492 = vmatpush.msra.mxu0 %v357
    %493 = vmatpush.msra.mxu0 %v356
    %494 = vmatpush.msra.mxu0 %v355
    %495 = vmatpush.msra.mxu0 %v354
    %496 = vmatpush.msra.mxu0 %v353
    %497 = vmatpush.msra.mxu0 %v352
    %498 = vmatpush.msra.mxu0 %v351
    %499 = vmatpush.msra.mxu0 %v350
    %500 = vmatpush.msra.mxu0 %v349
    %501 = vmatpush.msra.mxu0 %v348
    %502 = vmatpush.msra.mxu0 %v347
    %503 = vmatmul.f32.gmra.mxu0 %v294
    %v504 = vpop.f32.mrf.mxu0
    %v505 = vadd.f32 %v485, %v504
    %506 = vdwg.mxu0
    %507 = vmatpush.msra.mxu0 %v378
    %508 = vmatpush.msra.mxu0 %v377
    %509 = vmatpush.msra.mxu0 %v376
    %510 = vmatpush.msra.mxu0 %v375
    %511 = vmatpush.msra.mxu0 %v374
    %512 = vmatpush.msra.mxu0 %v373
    %513 = vmatpush.msra.mxu0 %v372
    %514 = vmatpush.msra.mxu0 %v371
    %515 = vmatpush.msra.mxu0 %v370
    %516 = vmatpush.msra.mxu0 %v369
    %517 = vmatpush.msra.mxu0 %v368
    %518 = vmatpush.msra.mxu0 %v367
    %519 = vmatpush.msra.mxu0 %v366
    %520 = vmatpush.msra.mxu0 %v365
    %521 = vmatpush.msra.mxu0 %v364
    %522 = vmatpush.msra.mxu0 %v363
    %523 = vmatmul.f32.gmra.mxu0 %v295
    %v524 = vpop.f32.mrf.mxu0
    %v525 = vadd.f32 %v505, %v524
    %526 = vdwg.mxu0
    %527 = vmatpush.msra.mxu0 %v394
    %528 = vmatpush.msra.mxu0 %v393
    %529 = vmatpush.msra.mxu0 %v392
    %530 = vmatpush.msra.mxu0 %v391
    %531 = vmatpush.msra.mxu0 %v390
    %532 = vmatpush.msra.mxu0 %v389
    %533 = vmatpush.msra.mxu0 %v388
    %534 = vmatpush.msra.mxu0 %v387
    %535 = vmatpush.msra.mxu0 %v386
    %536 = vmatpush.msra.mxu0 %v385
    %537 = vmatpush.msra.mxu0 %v384
    %538 = vmatpush.msra.mxu0 %v383
    %539 = vmatpush.msra.mxu0 %v382
    %540 = vmatpush.msra.mxu0 %v381
    %541 = vmatpush.msra.mxu0 %v380
    %542 = vmatpush.msra.mxu0 %v379
    %543 = vmatmul.f32.gmra.mxu0 %v296
    %v544 = vpop.f32.mrf.mxu0
    %v545 = vadd.f32 %v525, %v544
    %546 = vdwg.mxu0
    %547 = vmatpush.msra.mxu0 %v410
    %548 = vmatpush.msra.mxu0 %v409
    %549 = vmatpush.msra.mxu0 %v408
    %550 = vmatpush.msra.mxu0 %v407
    %551 = vmatpush.msra.mxu0 %v406
    %552 = vmatpush.msra.mxu0 %v405
    %553 = vmatpush.msra.mxu0 %v404
    %554 = vmatpush.msra.mxu0 %v403
    %555 = vmatpush.msra.mxu0 %v402
    %556 = vmatpush.msra.mxu0 %v401
    %557 = vmatpush.msra.mxu0 %v400
    %558 = vmatpush.msra.mxu0 %v399
    %559 = vmatpush.msra.mxu0 %v398
    %560 = vmatpush.msra.mxu0 %v397
    %561 = vmatpush.msra.mxu0 %v396
    %562 = vmatpush.msra.mxu0 %v395
    %563 = vmatmul.f32.gmra.mxu0 %v297
    %v564 = vpop.f32.mrf.mxu0
    %v565 = vadd.f32 %v545, %v564
    %566 = vdwg.mxu0
    %567 = vmatpush.msra.mxu0 %v426
    %568 = vmatpush.msra.mxu0 %v425
    %569 = vmatpush.msra.mxu0 %v424
    %570 = vmatpush.msra.mxu0 %v423
    %571 = vmatpush.msra.mxu0 %v422
    %572 = vmatpush.msra.mxu0 %v421
    %573 = vmatpush.msra.mxu0 %v420
    %574 = vmatpush.msra.mxu0 %v419
    %575 = vmatpush.msra.mxu0 %v418
    %576 = vmatpush.msra.mxu0 %v417
    %577 = vmatpush.msra.mxu0 %v416
    %578 = vmatpush.msra.mxu0 %v415
    %579 = vmatpush.msra.mxu0 %v414
    %580 = vmatpush.msra.mxu0 %v413
    %581 = vmatpush.msra.mxu0 %v412
    %582 = vmatpush.msra.mxu0 %v411
    %583 = vmatmul.f32.gmra.mxu0 %v298
    %v584 = vpop.f32.mrf.mxu0
    %v585 = vadd.f32 %v565, %v584
    %586 = vdwg.mxu0
    %v587 = vmax.f32 %v585, 0.0
    %v588 = vld [vmem:[%s6] sm:$0xff]
    %v589 = vld [vmem:[%s6 + $0x8] sm:$0xff]
    %v590 = vld [vmem:[%s6 + $0x10] sm:$0xff]
    %v591 = vld [vmem:[%s6 + $0x18] sm:$0xff]
    %v592 = vld [vmem:[%s6 + $0x20] sm:$0xff]
    %v593 = vld [vmem:[%s6 + $0x28] sm:$0xff]
    %v594 = vld [vmem:[%s6 + $0x30] sm:$0xff]
    %v595 = vld [vmem:[%s6 + $0x38] sm:$0xff]
    %v596 = vld [vmem:[%s6 + $0x40] sm:$0xff]
    %v597 = vld [vmem:[%s6 + $0x48] sm:$0xff]
    %v598 = vld [vmem:[%s6 + $0x50] sm:$0xff]
    %v599 = vld [vmem:[%s6 + $0x58] sm:$0xff]
    %v600 = vld [vmem:[%s6 + $0x60] sm:$0xff]
    %v601 = vld [vmem:[%s6 + $0x68] sm:$0xff]
    %v602 = vld [vmem:[%s6 + $0x70] sm:$0xff]
    %v603 = vld [vmem:[%s6 + $0x78] sm:$0xff]
    %v604 = vld [vmem:[%s6 + $0x80] sm:$0xff]
    %v605 = vld [vmem:[%s6 + $0x88] sm:$0xff]
    %v606 = vld [vmem:[%s6 + $0x90] sm:$0xff]
    %v607 = vld [vmem:[%s6 + $0x98] sm:$0xff]
    %v608 = vld [vmem:[%s6 + $0xa0] sm:$0xff]
    %v609 = vld [vmem:[%s6 + $0xa8] sm:$0xff]
    %v610 = vld [vmem:[%s6 + $0xb0] sm:$0xff]
    %v611 = vld [vmem:[%s6 + $0xb8] sm:$0xff]
    %v612 = vld [vmem:[%s6 + $0xc0] sm:$0xff]
    %v613 = vld [vmem:[%s6 + $0xc8] sm:$0xff]
    %v614 = vld [vmem:[%s6 + $0xd0] sm:$0xff]
    %v615 = vld [vmem:[%s6 + $0xd8] sm:$0xff]
    %v616 = vld [vmem:[%s6 + $0xe0] sm:$0xff]
    %v617 = vld [vmem:[%s6 + $0xe8] sm:$0xff]
    %v618 = vld [vmem:[%s6 + $0xf0] sm:$0xff]
    %v619 = vld [vmem:[%s6 + $0xf8] sm:$0xff]
    %v620 = vld [vmem:[%s6 + $0x100] sm:$0xff]
    %v621 = vld [vmem:[%s6 + $0x108] sm:$0xff]
    %v622 = vld [vmem:[%s6 + $0x110] sm:$0xff]
    %v623 = vld [vmem:[%s6 + $0x118] sm:$0xff]
    %v624 = vld [vmem:[%s6 + $0x120] sm:$0xff]
    %v625 = vld [vmem:[%s6 + $0x128] sm:$0xff]
    %v626 = vld [vmem:[%s6 + $0x130] sm:$0xff]
    %v627 = vld [vmem:[%s6 + $0x138] sm:$0xff]
    %v628 = vld [vmem:[%s6 + $0x140] sm:$0xff]
    %v629 = vld [vmem:[%s6 + $0x148] sm:$0xff]
    %v630 = vld [vmem:[%s6 + $0x150] sm:$0xff]
    %v631 = vld [vmem:[%s6 + $0x158] sm:$0xff]
    %v632 = vld [vmem:[%s6 + $0x160] sm:$0xff]
    %v633 = vld [vmem:[%s6 + $0x168] sm:$0xff]
    %v634 = vld [vmem:[%s6 + $0x170] sm:$0xff]
    %v635 = vld [vmem:[%s6 + $0x178] sm:$0xff]
    %v636 = vld [vmem:[%s6 + $0x180] sm:$0xff]
    %v637 = vld [vmem:[%s6 + $0x188] sm:$0xff]
    %v638 = vld [vmem:[%s6 + $0x190] sm:$0xff]
    %v639 = vld [vmem:[%s6 + $0x198] sm:$0xff]
    %v640 = vld [vmem:[%s6 + $0x1a0] sm:$0xff]
    %v641 = vld [vmem:[%s6 + $0x1a8] sm:$0xff]
    %v642 = vld [vmem:[%s6 + $0x1b0] sm:$0xff]
    %v643 = vld [vmem:[%s6 + $0x1b8] sm:$0xff]
    %v644 = vld [vmem:[%s6 + $0x1c0] sm:$0xff]
    %v645 = vld [vmem:[%s6 + $0x1c8] sm:$0xff]
    %v646 = vld [vmem:[%s6 + $0x1d0] sm:$0xff]
    %v647 = vld [vmem:[%s6 + $0x1d8] sm:$0xff]
    %v648 = vld [vmem:[%s6 + $0x1e0] sm:$0xff]
    %v649 = vld [vmem:[%s6 + $0x1e8] sm:$0xff]
    %v650 = vld [vmem:[%s6 + $0x1f0] sm:$0xff]
    %v651 = vld [vmem:[%s6 + $0x1f8] sm:$0xff]
    %vm652 = vcmask 523264
    %v654 = vsel %vm652, %v587, 0
    %656 = vmatpush.msra.mxu0 0.0
    %657 = vmatpush.msra.mxu0 0.0
    %658 = vmatpush.msra.mxu0 0.0
    %659 = vmatpush.msra.mxu0 0.0
    %660 = vmatpush.msra.mxu0 0.0
    %661 = vmatpush.msra.mxu0 0.0
    %662 = vmatpush.msra.mxu0 0.0
    %663 = vmatpush.msra.mxu0 0.0
    %664 = vmatpush.msra.mxu0 %v644
    %665 = vmatpush.msra.mxu0 %v636
    %666 = vmatpush.msra.mxu0 %v628
    %667 = vmatpush.msra.mxu0 %v620
    %668 = vmatpush.msra.mxu0 %v612
    %669 = vmatpush.msra.mxu0 %v604
    %670 = vmatpush.msra.mxu0 %v596
    %671 = vmatpush.msra.mxu0 %v588
    %672 = vmatmul.f32.gmra.mxu0 %v654
    %v673 = vpop.f32.mrf.mxu0
    %v674 = vadd.f32 0.0, %v673
    %675 = vdwg.mxu0
    %676 = vmatpush.msra.mxu0 0.0
    %677 = vmatpush.msra.mxu0 0.0
    %678 = vmatpush.msra.mxu0 0.0
    %679 = vmatpush.msra.mxu0 0.0
    %680 = vmatpush.msra.mxu0 0.0
    %681 = vmatpush.msra.mxu0 0.0
    %682 = vmatpush.msra.mxu0 0.0
    %683 = vmatpush.msra.mxu0 0.0
    %684 = vmatpush.msra.mxu0 %v645
    %685 = vmatpush.msra.mxu0 %v637
    %686 = vmatpush.msra.mxu0 %v629
    %687 = vmatpush.msra.mxu0 %v621
    %688 = vmatpush.msra.mxu0 %v613
    %689 = vmatpush.msra.mxu0 %v605
    %690 = vmatpush.msra.mxu0 %v597
    %691 = vmatpush.msra.mxu0 %v589
    %692 = vmatmul.f32.gmra.mxu0 %v654
    %v693 = vpop.f32.mrf.mxu0
    %v694 = vadd.f32 0.0, %v693
    %695 = vdwg.mxu0
    %696 = vmatpush.msra.mxu0 0.0
    %697 = vmatpush.msra.mxu0 0.0
    %698 = vmatpush.msra.mxu0 0.0
    %699 = vmatpush.msra.mxu0 0.0
    %700 = vmatpush.msra.mxu0 0.0
    %701 = vmatpush.msra.mxu0 0.0
    %702 = vmatpush.msra.mxu0 0.0
    %703 = vmatpush.msra.mxu0 0.0
    %704 = vmatpush.msra.mxu0 %v646
    %705 = vmatpush.msra.mxu0 %v638
    %706 = vmatpush.msra.mxu0 %v630
    %707 = vmatpush.msra.mxu0 %v622
    %708 = vmatpush.msra.mxu0 %v614
    %709 = vmatpush.msra.mxu0 %v606
    %710 = vmatpush.msra.mxu0 %v598
    %711 = vmatpush.msra.mxu0 %v590
    %712 = vmatmul.f32.gmra.mxu0 %v654
    %v713 = vpop.f32.mrf.mxu0
    %v714 = vadd.f32 0.0, %v713
    %715 = vdwg.mxu0
    %716 = vmatpush.msra.mxu0 0.0
    %717 = vmatpush.msra.mxu0 0.0
    %718 = vmatpush.msra.mxu0 0.0
    %719 = vmatpush.msra.mxu0 0.0
    %720 = vmatpush.msra.mxu0 0.0
    %721 = vmatpush.msra.mxu0 0.0
    %722 = vmatpush.msra.mxu0 0.0
    %723 = vmatpush.msra.mxu0 0.0
    %724 = vmatpush.msra.mxu0 %v647
    %725 = vmatpush.msra.mxu0 %v639
    %726 = vmatpush.msra.mxu0 %v631
    %727 = vmatpush.msra.mxu0 %v623
    %728 = vmatpush.msra.mxu0 %v615
    %729 = vmatpush.msra.mxu0 %v607
    %730 = vmatpush.msra.mxu0 %v599
    %731 = vmatpush.msra.mxu0 %v591
    %732 = vmatmul.f32.gmra.mxu0 %v654
    %v733 = vpop.f32.mrf.mxu0
    %v734 = vadd.f32 0.0, %v733
    %735 = vdwg.mxu0
    %736 = vmatpush.msra.mxu0 0.0
    %737 = vmatpush.msra.mxu0 0.0
    %738 = vmatpush.msra.mxu0 0.0
    %739 = vmatpush.msra.mxu0 0.0
    %740 = vmatpush.msra.mxu0 0.0
    %741 = vmatpush.msra.mxu0 0.0
    %742 = vmatpush.msra.mxu0 0.0
    %743 = vmatpush.msra.mxu0 0.0
    %744 = vmatpush.msra.mxu0 %v648
    %745 = vmatpush.msra.mxu0 %v640
    %746 = vmatpush.msra.mxu0 %v632
    %747 = vmatpush.msra.mxu0 %v624
    %748 = vmatpush.msra.mxu0 %v616
    %749 = vmatpush.msra.mxu0 %v608
    %750 = vmatpush.msra.mxu0 %v600
    %751 = vmatpush.msra.mxu0 %v592
    %752 = vmatmul.f32.gmra.mxu0 %v654
    %v753 = vpop.f32.mrf.mxu0
    %v754 = vadd.f32 0.0, %v753
    %755 = vdwg.mxu0
    %756 = vmatpush.msra.mxu0 0.0
    %757 = vmatpush.msra.mxu0 0.0
    %758 = vmatpush.msra.mxu0 0.0
    %759 = vmatpush.msra.mxu0 0.0
    %760 = vmatpush.msra.mxu0 0.0
    %761 = vmatpush.msra.mxu0 0.0
    %762 = vmatpush.msra.mxu0 0.0
    %763 = vmatpush.msra.mxu0 0.0
    %764 = vmatpush.msra.mxu0 %v649
    %765 = vmatpush.msra.mxu0 %v641
    %766 = vmatpush.msra.mxu0 %v633
    %767 = vmatpush.msra.mxu0 %v625
    %768 = vmatpush.msra.mxu0 %v617
    %769 = vmatpush.msra.mxu0 %v609
    %770 = vmatpush.msra.mxu0 %v601
    %771 = vmatpush.msra.mxu0 %v593
    %772 = vmatmul.f32.gmra.mxu0 %v654
    %v773 = vpop.f32.mrf.mxu0
    %v774 = vadd.f32 0.0, %v773
    %775 = vdwg.mxu0
    %776 = vmatpush.msra.mxu0 0.0
    %777 = vmatpush.msra.mxu0 0.0
    %778 = vmatpush.msra.mxu0 0.0
    %779 = vmatpush.msra.mxu0 0.0
    %780 = vmatpush.msra.mxu0 0.0
    %781 = vmatpush.msra.mxu0 0.0
    %782 = vmatpush.msra.mxu0 0.0
    %783 = vmatpush.msra.mxu0 0.0
    %784 = vmatpush.msra.mxu0 %v650
    %785 = vmatpush.msra.mxu0 %v642
    %786 = vmatpush.msra.mxu0 %v634
    %787 = vmatpush.msra.mxu0 %v626
    %788 = vmatpush.msra.mxu0 %v618
    %789 = vmatpush.msra.mxu0 %v610
    %790 = vmatpush.msra.mxu0 %v602
    %791 = vmatpush.msra.mxu0 %v594
    %792 = vmatmul.f32.gmra.mxu0 %v654
    %v793 = vpop.f32.mrf.mxu0
    %v794 = vadd.f32 0.0, %v793
    %795 = vdwg.mxu0
    %796 = vmatpush.msra.mxu0 0.0
    %797 = vmatpush.msra.mxu0 0.0
    %798 = vmatpush.msra.mxu0 0.0
    %799 = vmatpush.msra.mxu0 0.0
    %800 = vmatpush.msra.mxu0 0.0
    %801 = vmatpush.msra.mxu0 0.0
    %802 = vmatpush.msra.mxu0 0.0
    %803 = vmatpush.msra.mxu0 0.0
    %804 = vmatpush.msra.mxu0 %v651
    %805 = vmatpush.msra.mxu0 %v643
    %806 = vmatpush.msra.mxu0 %v635
    %807 = vmatpush.msra.mxu0 %v627
    %808 = vmatpush.msra.mxu0 %v619
    %809 = vmatpush.msra.mxu0 %v611
    %810 = vmatpush.msra.mxu0 %v603
    %811 = vmatpush.msra.mxu0 %v595
    %812 = vmatmul.f32.gmra.mxu0 %v654
    %v813 = vpop.f32.mrf.mxu0
    %v814 = vadd.f32 0.0, %v813
    %815 = vdwg.mxu0
    %v816 = vsub.f32 0.0, %v674
    %v817 = vsub.f32 0.0, %v694
    %v818 = vsub.f32 0.0, %v714
    %v819 = vsub.f32 0.0, %v734
    %v820 = vsub.f32 0.0, %v754
    %v821 = vsub.f32 0.0, %v774
    %v822 = vsub.f32 0.0, %v794
    %v823 = vsub.f32 0.0, %v814
    %v824 = vmul.f32 %v816, 1.442695
    %v825 = vpow.pop %v824
    %v826 = vmul.f32 %v817, 1.442695
    %v827 = vpow.pop %v826
    %v828 = vmul.f32 %v818, 1.442695
    %v829 = vpow.pop %v828
    %v830 = vmul.f32 %v819, 1.442695
    %v831 = vpow.pop %v830
    %v832 = vmul.f32 %v820, 1.442695
    %v833 = vpow.pop %v832
    %v834 = vmul.f32 %v821, 1.442695
    %v835 = vpow.pop %v834
    %v836 = vmul.f32 %v822, 1.442695
    %v837 = vpow.pop %v836
    %v838 = vmul.f32 %v823, 1.442695
    %v839 = vpow.pop %v838
    %v840 = vadd.f32 %v825, 1.0
    %v841 = vadd.f32 %v827, 1.0
    %v842 = vadd.f32 %v829, 1.0
    %v843 = vadd.f32 %v831, 1.0
    %v844 = vadd.f32 %v833, 1.0
    %v845 = vadd.f32 %v835, 1.0
    %v846 = vadd.f32 %v837, 1.0
    %v847 = vadd.f32 %v839, 1.0
    %v848 = vrcp.pop %v840
    %v849 = vmul.f32 %v840, %v848
    %v850 = vsub.f32 1.0, %v849
    %v851 = vmul.f32 %v848, %v850
    %v852 = vadd.f32 %v848, %v851
    %vm853 = vweird.f32 %v840
    %vm854 = vweird.f32 %v848
    %vm855 = vmor %vm853, %vm854
    %v856 = vsel %vm855, %v848, %v852
    %v857 = vand.u32 2147483647, %v840
    %vm858 = vcmp.eq.f32.partialorder %v857, 8.507059e+37
    %v859 = vand.u32 %v840, 2147483648
    %v860 = vor.u32 1.1754944e-38, %v859
    %v861 = vsel %vm858, %v860, %v856
    %v862 = vrcp.pop %v841
    %v863 = vmul.f32 %v841, %v862
    %v864 = vsub.f32 1.0, %v863
    %v865 = vmul.f32 %v862, %v864
    %v866 = vadd.f32 %v862, %v865
    %vm867 = vweird.f32 %v841
    %vm868 = vweird.f32 %v862
    %vm869 = vmor %vm867, %vm868
    %v870 = vsel %vm869, %v862, %v866
    %v871 = vand.u32 2147483647, %v841
    %vm872 = vcmp.eq.f32.partialorder %v871, 8.507059e+37
    %v873 = vand.u32 %v841, 2147483648
    %v874 = vor.u32 1.1754944e-38, %v873
    %v875 = vsel %vm872, %v874, %v870
    %v876 = vrcp.pop %v842
    %v877 = vmul.f32 %v842, %v876
    %v878 = vsub.f32 1.0, %v877
    %v879 = vmul.f32 %v876, %v878
    %v880 = vadd.f32 %v876, %v879
    %vm881 = vweird.f32 %v842
    %vm882 = vweird.f32 %v876
    %vm883 = vmor %vm881, %vm882
    %v884 = vsel %vm883, %v876, %v880
    %v885 = vand.u32 2147483647, %v842
    %vm886 = vcmp.eq.f32.partialorder %v885, 8.507059e+37
    %v887 = vand.u32 %v842, 2147483648
    %v888 = vor.u32 1.1754944e-38, %v887
    %v889 = vsel %vm886, %v888, %v884
    %v890 = vrcp.pop %v843
    %v891 = vmul.f32 %v843, %v890
    %v892 = vsub.f32 1.0, %v891
    %v893 = vmul.f32 %v890, %v892
    %v894 = vadd.f32 %v890, %v893
    %vm895 = vweird.f32 %v843
    %vm896 = vweird.f32 %v890
    %vm897 = vmor %vm895, %vm896
    %v898 = vsel %vm897, %v890, %v894
    %v899 = vand.u32 2147483647, %v843
    %vm900 = vcmp.eq.f32.partialorder %v899, 8.507059e+37
    %v901 = vand.u32 %v843, 2147483648
    %v902 = vor.u32 1.1754944e-38, %v901
    %v903 = vsel %vm900, %v902, %v898
    %v904 = vrcp.pop %v844
    %v905 = vmul.f32 %v844, %v904
    %v906 = vsub.f32 1.0, %v905
    %v907 = vmul.f32 %v904, %v906
    %v908 = vadd.f32 %v904, %v907
    %vm909 = vweird.f32 %v844
    %vm910 = vweird.f32 %v904
    %vm911 = vmor %vm909, %vm910
    %v912 = vsel %vm911, %v904, %v908
    %v913 = vand.u32 2147483647, %v844
    %vm914 = vcmp.eq.f32.partialorder %v913, 8.507059e+37
    %v915 = vand.u32 %v844, 2147483648
    %v916 = vor.u32 1.1754944e-38, %v915
    %v917 = vsel %vm914, %v916, %v912
    %v918 = vrcp.pop %v845
    %v919 = vmul.f32 %v845, %v918
    %v920 = vsub.f32 1.0, %v919
    %v921 = vmul.f32 %v918, %v920
    %v922 = vadd.f32 %v918, %v921
    %vm923 = vweird.f32 %v845
    %vm924 = vweird.f32 %v918
    %vm925 = vmor %vm923, %vm924
    %v926 = vsel %vm925, %v918, %v922
    %v927 = vand.u32 2147483647, %v845
    %vm928 = vcmp.eq.f32.partialorder %v927, 8.507059e+37
    %v929 = vand.u32 %v845, 2147483648
    %v930 = vor.u32 1.1754944e-38, %v929
    %v931 = vsel %vm928, %v930, %v926
    %v932 = vrcp.pop %v846
    %v933 = vmul.f32 %v846, %v932
    %v934 = vsub.f32 1.0, %v933
    %v935 = vmul.f32 %v932, %v934
    %v936 = vadd.f32 %v932, %v935
    %vm937 = vweird.f32 %v846
    %vm938 = vweird.f32 %v932
    %vm939 = vmor %vm937, %vm938
    %v940 = vsel %vm939, %v932, %v936
    %v941 = vand.u32 2147483647, %v846
    %vm942 = vcmp.eq.f32.partialorder %v941, 8.507059e+37
    %v943 = vand.u32 %v846, 2147483648
    %v944 = vor.u32 1.1754944e-38, %v943
    %v945 = vsel %vm942, %v944, %v940
    %v946 = vrcp.pop %v847
    %v947 = vmul.f32 %v847, %v946
    %v948 = vsub.f32 1.0, %v947
    %v949 = vmul.f32 %v946, %v948
    %v950 = vadd.f32 %v946, %v949
    %vm951 = vweird.f32 %v847
    %vm952 = vweird.f32 %v946
    %vm953 = vmor %vm951, %vm952
    %v954 = vsel %vm953, %v946, %v950
    %v955 = vand.u32 2147483647, %v847
    %vm956 = vcmp.eq.f32.partialorder %v955, 8.507059e+37
    %v957 = vand.u32 %v847, 2147483648
    %v958 = vor.u32 1.1754944e-38, %v957
    %v959 = vsel %vm956, %v958, %v954
    %v960 = vmul.f32 %v291, %v861
    %v961 = vmul.f32 %v292, %v875
    %v962 = vmul.f32 %v293, %v889
    %v963 = vmul.f32 %v294, %v903
    %v964 = vmul.f32 %v295, %v917
    %v965 = vmul.f32 %v296, %v931
    %v966 = vmul.f32 %v297, %v945
    %v967 = vmul.f32 %v298, %v959
    %v968 = vld [vmem:[%s7] sm:$0xff]
    %v970 = vperm.slane %v968, 0
    %v971 = vperm.slane %v968, 1
    %v972 = vperm.slane %v968, 2
    %v973 = vperm.slane %v968, 3
    %v974 = vperm.slane %v968, 4
    %v975 = vperm.slane %v968, 5
    %v976 = vperm.slane %v968, 6
    %v977 = vperm.slane %v968, 7
    %v986 = vmul.f32 %v960, %v970
    %v987 = vmul.f32 %v961, %v971
    %v988 = vmul.f32 %v962, %v972
    %v989 = vmul.f32 %v963, %v973
    %v990 = vmul.f32 %v964, %v974
    %v991 = vmul.f32 %v965, %v975
    %v992 = vmul.f32 %v966, %v976
    %v993 = vmul.f32 %v967, %v977
    %v994 = vld [vmem:[%s8] sm:$0xff]
    %v996 = vperm.slane %v994, 0
    %v997 = vperm.slane %v994, 1
    %v998 = vperm.slane %v994, 2
    %v999 = vperm.slane %v994, 3
    %v1000 = vperm.slane %v994, 4
    %v1001 = vperm.slane %v994, 5
    %v1002 = vperm.slane %v994, 6
    %v1003 = vperm.slane %v994, 7
    %v1012 = vadd.f32 %v986, %v996
    %v1013 = vadd.f32 %v987, %v997
    %v1014 = vadd.f32 %v988, %v998
    %v1015 = vadd.f32 %v989, %v999
    %v1016 = vadd.f32 %v990, %v1000
    %v1017 = vadd.f32 %v991, %v1001
    %v1018 = vadd.f32 %v992, %v1002
    %v1019 = vadd.f32 %v993, %v1003
    %v1020 = vld [vmem:[%s9] sm:$0xff]
    %v1021 = vld [vmem:[%s9 + $0x8] sm:$0xff]
    %v1022 = vld [vmem:[%s9 + $0x10] sm:$0xff]
    %v1023 = vld [vmem:[%s9 + $0x18] sm:$0xff]
    %v1024 = vld [vmem:[%s9 + $0x20] sm:$0xff]
    %v1025 = vld [vmem:[%s9 + $0x28] sm:$0xff]
    %v1026 = vld [vmem:[%s9 + $0x30] sm:$0xff]
    %v1027 = vld [vmem:[%s9 + $0x38] sm:$0xff]
    %v1028 = vld [vmem:[%s9 + $0x40] sm:$0xff]
    %v1029 = vld [vmem:[%s9 + $0x48] sm:$0xff]
    %v1030 = vld [vmem:[%s9 + $0x50] sm:$0xff]
    %v1031 = vld [vmem:[%s9 + $0x58] sm:$0xff]
    %v1032 = vld [vmem:[%s9 + $0x60] sm:$0xff]
    %v1033 = vld [vmem:[%s9 + $0x68] sm:$0xff]
    %v1034 = vld [vmem:[%s9 + $0x70] sm:$0xff]
    %v1035 = vld [vmem:[%s9 + $0x78] sm:$0xff]
    %v1036 = vld [vmem:[%s9 + $0x80] sm:$0xff]
    %v1037 = vld [vmem:[%s9 + $0x88] sm:$0xff]
    %v1038 = vld [vmem:[%s9 + $0x90] sm:$0xff]
    %v1039 = vld [vmem:[%s9 + $0x98] sm:$0xff]
    %v1040 = vld [vmem:[%s9 + $0xa0] sm:$0xff]
    %v1041 = vld [vmem:[%s9 + $0xa8] sm:$0xff]
    %v1042 = vld [vmem:[%s9 + $0xb0] sm:$0xff]
    %v1043 = vld [vmem:[%s9 + $0xb8] sm:$0xff]
    %v1044 = vld [vmem:[%s9 + $0xc0] sm:$0xff]
    %v1045 = vld [vmem:[%s9 + $0xc8] sm:$0xff]
    %v1046 = vld [vmem:[%s9 + $0xd0] sm:$0xff]
    %v1047 = vld [vmem:[%s9 + $0xd8] sm:$0xff]
    %v1048 = vld [vmem:[%s9 + $0xe0] sm:$0xff]
    %v1049 = vld [vmem:[%s9 + $0xe8] sm:$0xff]
    %v1050 = vld [vmem:[%s9 + $0xf0] sm:$0xff]
    %v1051 = vld [vmem:[%s9 + $0xf8] sm:$0xff]
    %v1052 = vld [vmem:[%s9 + $0x100] sm:$0xff]
    %v1053 = vld [vmem:[%s9 + $0x108] sm:$0xff]
    %v1054 = vld [vmem:[%s9 + $0x110] sm:$0xff]
    %v1055 = vld [vmem:[%s9 + $0x118] sm:$0xff]
    %v1056 = vld [vmem:[%s9 + $0x120] sm:$0xff]
    %v1057 = vld [vmem:[%s9 + $0x128] sm:$0xff]
    %v1058 = vld [vmem:[%s9 + $0x130] sm:$0xff]
    %v1059 = vld [vmem:[%s9 + $0x138] sm:$0xff]
    %v1060 = vld [vmem:[%s9 + $0x140] sm:$0xff]
    %v1061 = vld [vmem:[%s9 + $0x148] sm:$0xff]
    %v1062 = vld [vmem:[%s9 + $0x150] sm:$0xff]
    %v1063 = vld [vmem:[%s9 + $0x158] sm:$0xff]
    %v1064 = vld [vmem:[%s9 + $0x160] sm:$0xff]
    %v1065 = vld [vmem:[%s9 + $0x168] sm:$0xff]
    %v1066 = vld [vmem:[%s9 + $0x170] sm:$0xff]
    %v1067 = vld [vmem:[%s9 + $0x178] sm:$0xff]
    %v1068 = vld [vmem:[%s9 + $0x180] sm:$0xff]
    %v1069 = vld [vmem:[%s9 + $0x188] sm:$0xff]
    %v1070 = vld [vmem:[%s9 + $0x190] sm:$0xff]
    %v1071 = vld [vmem:[%s9 + $0x198] sm:$0xff]
    %v1072 = vld [vmem:[%s9 + $0x1a0] sm:$0xff]
    %v1073 = vld [vmem:[%s9 + $0x1a8] sm:$0xff]
    %v1074 = vld [vmem:[%s9 + $0x1b0] sm:$0xff]
    %v1075 = vld [vmem:[%s9 + $0x1b8] sm:$0xff]
    %v1076 = vld [vmem:[%s9 + $0x1c0] sm:$0xff]
    %v1077 = vld [vmem:[%s9 + $0x1c8] sm:$0xff]
    %v1078 = vld [vmem:[%s9 + $0x1d0] sm:$0xff]
    %v1079 = vld [vmem:[%s9 + $0x1d8] sm:$0xff]
    %v1080 = vld [vmem:[%s9 + $0x1e0] sm:$0xff]
    %v1081 = vld [vmem:[%s9 + $0x1e8] sm:$0xff]
    %v1082 = vld [vmem:[%s9 + $0x1f0] sm:$0xff]
    %v1083 = vld [vmem:[%s9 + $0x1f8] sm:$0xff]
    %v1084 = vld [vmem:[%s9 + $0x200] sm:$0xff]
    %v1085 = vld [vmem:[%s9 + $0x208] sm:$0xff]
    %v1086 = vld [vmem:[%s9 + $0x210] sm:$0xff]
    %v1087 = vld [vmem:[%s9 + $0x218] sm:$0xff]
    %v1088 = vld [vmem:[%s9 + $0x220] sm:$0xff]
    %v1089 = vld [vmem:[%s9 + $0x228] sm:$0xff]
    %v1090 = vld [vmem:[%s9 + $0x230] sm:$0xff]
    %v1091 = vld [vmem:[%s9 + $0x238] sm:$0xff]
    %v1092 = vld [vmem:[%s9 + $0x240] sm:$0xff]
    %v1093 = vld [vmem:[%s9 + $0x248] sm:$0xff]
    %v1094 = vld [vmem:[%s9 + $0x250] sm:$0xff]
    %v1095 = vld [vmem:[%s9 + $0x258] sm:$0xff]
    %v1096 = vld [vmem:[%s9 + $0x260] sm:$0xff]
    %v1097 = vld [vmem:[%s9 + $0x268] sm:$0xff]
    %v1098 = vld [vmem:[%s9 + $0x270] sm:$0xff]
    %v1099 = vld [vmem:[%s9 + $0x278] sm:$0xff]
    %v1100 = vld [vmem:[%s9 + $0x280] sm:$0xff]
    %v1101 = vld [vmem:[%s9 + $0x288] sm:$0xff]
    %v1102 = vld [vmem:[%s9 + $0x290] sm:$0xff]
    %v1103 = vld [vmem:[%s9 + $0x298] sm:$0xff]
    %v1104 = vld [vmem:[%s9 + $0x2a0] sm:$0xff]
    %v1105 = vld [vmem:[%s9 + $0x2a8] sm:$0xff]
    %v1106 = vld [vmem:[%s9 + $0x2b0] sm:$0xff]
    %v1107 = vld [vmem:[%s9 + $0x2b8] sm:$0xff]
    %v1108 = vld [vmem:[%s9 + $0x2c0] sm:$0xff]
    %v1109 = vld [vmem:[%s9 + $0x2c8] sm:$0xff]
    %v1110 = vld [vmem:[%s9 + $0x2d0] sm:$0xff]
    %v1111 = vld [vmem:[%s9 + $0x2d8] sm:$0xff]
    %v1112 = vld [vmem:[%s9 + $0x2e0] sm:$0xff]
    %v1113 = vld [vmem:[%s9 + $0x2e8] sm:$0xff]
    %v1114 = vld [vmem:[%s9 + $0x2f0] sm:$0xff]
    %v1115 = vld [vmem:[%s9 + $0x2f8] sm:$0xff]
    %v1116 = vld [vmem:[%s9 + $0x300] sm:$0xff]
    %v1117 = vld [vmem:[%s9 + $0x308] sm:$0xff]
    %v1118 = vld [vmem:[%s9 + $0x310] sm:$0xff]
    %v1119 = vld [vmem:[%s9 + $0x318] sm:$0xff]
    %v1120 = vld [vmem:[%s9 + $0x320] sm:$0xff]
    %v1121 = vld [vmem:[%s9 + $0x328] sm:$0xff]
    %v1122 = vld [vmem:[%s9 + $0x330] sm:$0xff]
    %v1123 = vld [vmem:[%s9 + $0x338] sm:$0xff]
    %v1124 = vld [vmem:[%s9 + $0x340] sm:$0xff]
    %v1125 = vld [vmem:[%s9 + $0x348] sm:$0xff]
    %v1126 = vld [vmem:[%s9 + $0x350] sm:$0xff]
    %v1127 = vld [vmem:[%s9 + $0x358] sm:$0xff]
    %v1128 = vld [vmem:[%s9 + $0x360] sm:$0xff]
    %v1129 = vld [vmem:[%s9 + $0x368] sm:$0xff]
    %v1130 = vld [vmem:[%s9 + $0x370] sm:$0xff]
    %v1131 = vld [vmem:[%s9 + $0x378] sm:$0xff]
    %v1132 = vld [vmem:[%s9 + $0x380] sm:$0xff]
    %v1133 = vld [vmem:[%s9 + $0x388] sm:$0xff]
    %v1134 = vld [vmem:[%s9 + $0x390] sm:$0xff]
    %v1135 = vld [vmem:[%s9 + $0x398] sm:$0xff]
    %v1136 = vld [vmem:[%s9 + $0x3a0] sm:$0xff]
    %v1137 = vld [vmem:[%s9 + $0x3a8] sm:$0xff]
    %v1138 = vld [vmem:[%s9 + $0x3b0] sm:$0xff]
    %v1139 = vld [vmem:[%s9 + $0x3b8] sm:$0xff]
    %v1140 = vld [vmem:[%s9 + $0x3c0] sm:$0xff]
    %v1141 = vld [vmem:[%s9 + $0x3c8] sm:$0xff]
    %v1142 = vld [vmem:[%s9 + $0x3d0] sm:$0xff]
    %v1143 = vld [vmem:[%s9 + $0x3d8] sm:$0xff]
    %v1144 = vld [vmem:[%s9 + $0x3e0] sm:$0xff]
    %v1145 = vld [vmem:[%s9 + $0x3e8] sm:$0xff]
    %v1146 = vld [vmem:[%s9 + $0x3f0] sm:$0xff]
    %v1147 = vld [vmem:[%s9 + $0x3f8] sm:$0xff]
    %v1148 = vld [vmem:[%s10] sm:$0x1]
    %v1150 = vperm.slane %v1148, 0
    %1152 = vmatpush.msra.mxu0 %v1035
    %1153 = vmatpush.msra.mxu0 %v1034
    %1154 = vmatpush.msra.mxu0 %v1033
    %1155 = vmatpush.msra.mxu0 %v1032
    %1156 = vmatpush.msra.mxu0 %v1031
    %1157 = vmatpush.msra.mxu0 %v1030
    %1158 = vmatpush.msra.mxu0 %v1029
    %1159 = vmatpush.msra.mxu0 %v1028
    %1160 = vmatpush.msra.mxu0 %v1027
    %1161 = vmatpush.msra.mxu0 %v1026
    %1162 = vmatpush.msra.mxu0 %v1025
    %1163 = vmatpush.msra.mxu0 %v1024
    %1164 = vmatpush.msra.mxu0 %v1023
    %1165 = vmatpush.msra.mxu0 %v1022
    %1166 = vmatpush.msra.mxu0 %v1021
    %1167 = vmatpush.msra.mxu0 %v1020
    %1168 = vmatmul.f32.gmra.mxu0 %v1012
    %v1169 = vpop.f32.mrf.mxu0
    %v1170 = vadd.f32 %v1150, %v1169
    %1171 = vdwg.mxu0
    %1172 = vmatpush.msra.mxu0 %v1051
    %1173 = vmatpush.msra.mxu0 %v1050
    %1174 = vmatpush.msra.mxu0 %v1049
    %1175 = vmatpush.msra.mxu0 %v1048
    %1176 = vmatpush.msra.mxu0 %v1047
    %1177 = vmatpush.msra.mxu0 %v1046
    %1178 = vmatpush.msra.mxu0 %v1045
    %1179 = vmatpush.msra.mxu0 %v1044
    %1180 = vmatpush.msra.mxu0 %v1043
    %1181 = vmatpush.msra.mxu0 %v1042
    %1182 = vmatpush.msra.mxu0 %v1041
    %1183 = vmatpush.msra.mxu0 %v1040
    %1184 = vmatpush.msra.mxu0 %v1039
    %1185 = vmatpush.msra.mxu0 %v1038
    %1186 = vmatpush.msra.mxu0 %v1037
    %1187 = vmatpush.msra.mxu0 %v1036
    %1188 = vmatmul.f32.gmra.mxu0 %v1013
    %v1189 = vpop.f32.mrf.mxu0
    %v1190 = vadd.f32 %v1170, %v1189
    %1191 = vdwg.mxu0
    %1192 = vmatpush.msra.mxu0 %v1067
    %1193 = vmatpush.msra.mxu0 %v1066
    %1194 = vmatpush.msra.mxu0 %v1065
    %1195 = vmatpush.msra.mxu0 %v1064
    %1196 = vmatpush.msra.mxu0 %v1063
    %1197 = vmatpush.msra.mxu0 %v1062
    %1198 = vmatpush.msra.mxu0 %v1061
    %1199 = vmatpush.msra.mxu0 %v1060
    %1200 = vmatpush.msra.mxu0 %v1059
    %1201 = vmatpush.msra.mxu0 %v1058
    %1202 = vmatpush.msra.mxu0 %v1057
    %1203 = vmatpush.msra.mxu0 %v1056
    %1204 = vmatpush.msra.mxu0 %v1055
    %1205 = vmatpush.msra.mxu0 %v1054
    %1206 = vmatpush.msra.mxu0 %v1053
    %1207 = vmatpush.msra.mxu0 %v1052
    %1208 = vmatmul.f32.gmra.mxu0 %v1014
    %v1209 = vpop.f32.mrf.mxu0
    %v1210 = vadd.f32 %v1190, %v1209
    %1211 = vdwg.mxu0
    %1212 = vmatpush.msra.mxu0 %v1083
    %1213 = vmatpush.msra.mxu0 %v1082
    %1214 = vmatpush.msra.mxu0 %v1081
    %1215 = vmatpush.msra.mxu0 %v1080
    %1216 = vmatpush.msra.mxu0 %v1079
    %1217 = vmatpush.msra.mxu0 %v1078
    %1218 = vmatpush.msra.mxu0 %v1077
    %1219 = vmatpush.msra.mxu0 %v1076
    %1220 = vmatpush.msra.mxu0 %v1075
    %1221 = vmatpush.msra.mxu0 %v1074
    %1222 = vmatpush.msra.mxu0 %v1073
    %1223 = vmatpush.msra.mxu0 %v1072
    %1224 = vmatpush.msra.mxu0 %v1071
    %1225 = vmatpush.msra.mxu0 %v1070
    %1226 = vmatpush.msra.mxu0 %v1069
    %1227 = vmatpush.msra.mxu0 %v1068
    %1228 = vmatmul.f32.gmra.mxu0 %v1015
    %v1229 = vpop.f32.mrf.mxu0
    %v1230 = vadd.f32 %v1210, %v1229
    %1231 = vdwg.mxu0
    %1232 = vmatpush.msra.mxu0 %v1099
    %1233 = vmatpush.msra.mxu0 %v1098
    %1234 = vmatpush.msra.mxu0 %v1097
    %1235 = vmatpush.msra.mxu0 %v1096
    %1236 = vmatpush.msra.mxu0 %v1095
    %1237 = vmatpush.msra.mxu0 %v1094
    %1238 = vmatpush.msra.mxu0 %v1093
    %1239 = vmatpush.msra.mxu0 %v1092
    %1240 = vmatpush.msra.mxu0 %v1091
    %1241 = vmatpush.msra.mxu0 %v1090
    %1242 = vmatpush.msra.mxu0 %v1089
    %1243 = vmatpush.msra.mxu0 %v1088
    %1244 = vmatpush.msra.mxu0 %v1087
    %1245 = vmatpush.msra.mxu0 %v1086
    %1246 = vmatpush.msra.mxu0 %v1085
    %1247 = vmatpush.msra.mxu0 %v1084
    %1248 = vmatmul.f32.gmra.mxu0 %v1016
    %v1249 = vpop.f32.mrf.mxu0
    %v1250 = vadd.f32 %v1230, %v1249
    %1251 = vdwg.mxu0
    %1252 = vmatpush.msra.mxu0 %v1115
    %1253 = vmatpush.msra.mxu0 %v1114
    %1254 = vmatpush.msra.mxu0 %v1113
    %1255 = vmatpush.msra.mxu0 %v1112
    %1256 = vmatpush.msra.mxu0 %v1111
    %1257 = vmatpush.msra.mxu0 %v1110
    %1258 = vmatpush.msra.mxu0 %v1109
    %1259 = vmatpush.msra.mxu0 %v1108
    %1260 = vmatpush.msra.mxu0 %v1107
    %1261 = vmatpush.msra.mxu0 %v1106
    %1262 = vmatpush.msra.mxu0 %v1105
    %1263 = vmatpush.msra.mxu0 %v1104
    %1264 = vmatpush.msra.mxu0 %v1103
    %1265 = vmatpush.msra.mxu0 %v1102
    %1266 = vmatpush.msra.mxu0 %v1101
    %1267 = vmatpush.msra.mxu0 %v1100
    %1268 = vmatmul.f32.gmra.mxu0 %v1017
    %v1269 = vpop.f32.mrf.mxu0
    %v1270 = vadd.f32 %v1250, %v1269
    %1271 = vdwg.mxu0
    %1272 = vmatpush.msra.mxu0 %v1131
    %1273 = vmatpush.msra.mxu0 %v1130
    %1274 = vmatpush.msra.mxu0 %v1129
    %1275 = vmatpush.msra.mxu0 %v1128
    %1276 = vmatpush.msra.mxu0 %v1127
    %1277 = vmatpush.msra.mxu0 %v1126
    %1278 = vmatpush.msra.mxu0 %v1125
    %1279 = vmatpush.msra.mxu0 %v1124
    %1280 = vmatpush.msra.mxu0 %v1123
    %1281 = vmatpush.msra.mxu0 %v1122
    %1282 = vmatpush.msra.mxu0 %v1121
    %1283 = vmatpush.msra.mxu0 %v1120
    %1284 = vmatpush.msra.mxu0 %v1119
    %1285 = vmatpush.msra.mxu0 %v1118
    %1286 = vmatpush.msra.mxu0 %v1117
    %1287 = vmatpush.msra.mxu0 %v1116
    %1288 = vmatmul.f32.gmra.mxu0 %v1018
    %v1289 = vpop.f32.mrf.mxu0
    %v1290 = vadd.f32 %v1270, %v1289
    %1291 = vdwg.mxu0
    %1292 = vmatpush.msra.mxu0 %v1147
    %1293 = vmatpush.msra.mxu0 %v1146
    %1294 = vmatpush.msra.mxu0 %v1145
    %1295 = vmatpush.msra.mxu0 %v1144
    %1296 = vmatpush.msra.mxu0 %v1143
    %1297 = vmatpush.msra.mxu0 %v1142
    %1298 = vmatpush.msra.mxu0 %v1141
    %1299 = vmatpush.msra.mxu0 %v1140
    %1300 = vmatpush.msra.mxu0 %v1139
    %1301 = vmatpush.msra.mxu0 %v1138
    %1302 = vmatpush.msra.mxu0 %v1137
    %1303 = vmatpush.msra.mxu0 %v1136
    %1304 = vmatpush.msra.mxu0 %v1135
    %1305 = vmatpush.msra.mxu0 %v1134
    %1306 = vmatpush.msra.mxu0 %v1133
    %1307 = vmatpush.msra.mxu0 %v1132
    %1308 = vmatmul.f32.gmra.mxu0 %v1019
    %v1309 = vpop.f32.mrf.mxu0
    %v1310 = vadd.f32 %v1290, %v1309
    %1311 = vdwg.mxu0
    %1312 = vst [vmem:[#allocation2] sm:$0x3] %v1310
    // Predicated region
    $region46: #{classifier_block.1} parent=1 // pred_check
      _
    $region47: #{classifier_block.1} parent=1 // pred_check_branch
      %1314 = sbr.rel (0) target = $region49
    $region48: #{classifier_block.1} parent=1 // pred_region
      %1316 = vsyncadd [#allocation3], 0
      %s1318 = sshll.u32 [#allocation2], 4
      %s1319 = int_to_ptr.vmem [resolvable:$true] %s1318
      %s1320 = sshll.u32 %s11, 4
      %s1321 = int_to_ptr.hbm [resolvable:$true] %s1320
      %1323 = dma.vmem_to_hbm [thread:$0]  %s1319, 32, %s1321, [#allocation3]
    $region49: #{classifier_block.1} parent=1 // pred_fallthru
      _
    // Predicated region
    $region50: #{classifier_block.1} parent=1 // pred_check
      _
    $region51: #{classifier_block.1} parent=1 // pred_check_branch
      %1325 = sbr.rel (0) target = $region53
    $region52: #{classifier_block.1} parent=1 // pred_region
      %1327 = dma.done [#allocation3], 32
    $region53: #{classifier_block.1} parent=1 // pred_fallthru
      _
    %1328 = vsyncpa [#allocation3], 1

</llo_original>
